<compile_context>
chip_gen: v7x
topology: tpu7x:2x2x1
jax: 0.10.0
libtpu: 0.0.40
codegen_flags: <defaults>
</compile_context>

<pallas_src>
import functools
import math

import jax
import jax.numpy as jnp
from jax.experimental import pallas as pl
from jax.experimental.pallas import tpu as pltpu

MB = 1024 * 1024


# ----------------------------- in-kernel math helpers -----------------------------

def _erf(x):
    # Abramowitz & Stegun 7.1.26 rational approximation, |err| < 1.5e-7
    # (exact-GELU at fp32 precision), built only from ops that lower on Mosaic.
    p = 0.3275911
    a1, a2, a3, a4, a5 = 0.254829592, -0.284496736, 1.421413741, -1.453152027, 1.061405429
    s = jnp.where(x >= 0.0, 1.0, -1.0)
    ax = jnp.abs(x)
    t = 1.0 / (1.0 + p * ax)
    poly = ((((a5 * t + a4) * t + a3) * t + a2) * t + a1) * t
    return s * (1.0 - poly * jnp.exp(-ax * ax))


def _gelu_exact(x):
    # TODO(synk): if VALU ever becomes the binding slot, switch to an EUP tanh-GELU
    # (tolerance permitting); kept erf-exact here to match nn.GELU / PyTorch semantics.
    return 0.5 * x * (1.0 + _erf(x * (1.0 / math.sqrt(2.0))))


def _layernorm(h, g, b, eps=1e-6):
    mu = jnp.mean(h, axis=-1, keepdims=True)
    var = jnp.mean(jnp.square(h - mu), axis=-1, keepdims=True)
    return (h - mu) * jax.lax.rsqrt(var + eps) * g + b


# ----------------------------------- kernel ---------------------------------------

def transformer_block_kernel(
    x_ref,
    ln1_g_ref, ln1_b_ref,
    wq_ref, bq_ref,
    wkv_ref, bkv_ref,
    wop_ref, bop_ref,
    ln2_g_ref, ln2_b_ref,
    w1_ref, b1_ref, w2_ref, b2_ref,
    out_ref,
    k_sc, v_sc, h_sc,
    *, n_heads, q_tile, use_approx_recip,
):
    f32 = jnp.float32
    S = x_ref.shape[1]
    D = x_ref.shape[2]
    dh = D // n_heads
    cdt = wq_ref.dtype                       # MXU operand dtype (bf16 fast path / fp32 faithful)
    q_idx = pl.program_id(1)

    # ---- once per batch element: LayerNorm1 over the full sequence + K/V projections ----
    @pl.when(q_idx == 0)
    def _():
        h_full = _layernorm(x_ref[0], ln1_g_ref[...], ln1_b_ref[...])              # (S, D) fp32
        h_sc[...] = h_full.astype(cdt)
        # One wide (S, D) @ (D, 2D) matmul for K and V (full MXU column occupancy).
        kv = jnp.dot(h_full.astype(cdt), wkv_ref[...],
                     preferred_element_type=f32) + bkv_ref[...]                    # (S, 2D) fp32
        kv = kv.astype(cdt)
        for h in range(n_heads):                                                   # head split: static lane slices
            k_sc[h] = kv[:, h * dh:(h + 1) * dh]
            v_sc[h] = kv[:, D + h * dh:D + (h + 1) * dh]

    # ---- per query-row tile ----
    if q_tile == S:                                          # single-tile case: no dynamic slicing
        x_tile = x_ref[0]                                    # (tq, D) fp32
        h_tile = h_sc[...]                                   # (tq, D) cdt (already normed)
    else:
        row0 = pl.multiple_of(q_idx * q_tile, 8)
        x_tile = x_ref[0, pl.ds(row0, q_tile), :]
        h_tile = h_sc[pl.ds(row0, q_tile), :]

    # Q projection: one wide (tq, D) @ (D, D) matmul; 1/sqrt(dh) folded into wq/bq on host.
    q2d = jnp.dot(h_tile, wq_ref[...], preferred_element_type=f32) + bq_ref[...]   # (tq, D) fp32
    q2d = q2d.astype(cdt)                                                          # single downcast
    q3 = jnp.stack([q2d[:, h * dh:(h + 1) * dh] for h in range(n_heads)], axis=0)  # (H, tq, dh)

    # Per-head attention (leading-batch contractions over the head axis).
    scores = jnp.einsum("hqe,hke->hqk", q3, k_sc[...],
                        preferred_element_type=f32)                                # (H, tq, S) fp32
    scores = scores - jnp.max(scores, axis=-1, keepdims=True)
    e = jnp.exp(scores)
    denom = jnp.sum(e, axis=-1, keepdims=True)
    if use_approx_recip:
        probs = e * pl.reciprocal(denom, approx=True)        # EUP slot; bf16 fast path only
    else:
        probs = e / denom                                    # exact, faithful fp32 path

    o3 = jnp.einsum("hqk,hke->hqe", probs.astype(cdt), v_sc[...],
                    preferred_element_type=f32)                                    # (H, tq, dh) fp32

    # Merge heads back to (tq, D) and run ONE fused output projection (proj_out ∘ proj).
    o2d = jnp.concatenate([o3[h] for h in range(n_heads)], axis=-1)                # (tq, D)
    attn = jnp.dot(o2d.astype(cdt), wop_ref[...],
                   preferred_element_type=f32) + bop_ref[...]                      # (tq, D)

    # ---- residual 1 (dropout == identity) ----
    x1 = x_tile + attn

    # ---- norm2 + position-wise feed-forward + residual 2 ----
    h2 = _layernorm(x1, ln2_g_ref[...], ln2_b_ref[...])
    f = jnp.dot(h2.astype(cdt), w1_ref[...], preferred_element_type=f32) + b1_ref[...]   # (tq, FF)
    f = _gelu_exact(f)
    f = jnp.dot(f.astype(cdt), w2_ref[...], preferred_element_type=f32) + b2_ref[...]    # (tq, D)
    out_ref[0] = (x1 + f).astype(out_ref.dtype)


# ----------------------------- host-side weight prep --------------------------------

def _prepare_params(p, n_heads, compute_dtype):
    """Rearrange PyTorch-convention weights once on the host into kernel-ready layouts."""
    f32 = jnp.float32
    D = p["wq"].shape[0]
    dh = D // n_heads
    scale = 1.0 / math.sqrt(dh)

    # nn.Linear stores W as (out, in); the kernel consumes (in, out) so matmuls are h @ W.
    wq_t = (p["wq"].T * scale).astype(compute_dtype)                  # (D, D), softmax scale folded in
    bq = (p["bq"].reshape(1, D) * scale).astype(f32)

    wkv_t = jnp.concatenate([p["wk"].T, p["wv"].T], axis=1).astype(compute_dtype)      # (D, 2D)
    bkv = jnp.concatenate([p["bk"].reshape(1, D), p["bv"].reshape(1, D)], axis=1).astype(f32)

    # Fuse attn.proj_out with the block-level proj (valid in eval mode: dropout == identity):
    #   y = (o @ Wo^T + bo) @ Wp^T + bp = o @ (Wo^T @ Wp^T) + (bo @ Wp^T + bp)
    wop = (p["wo"].T @ p["wp"].T).astype(compute_dtype)               # (D, D)
    bop = (p["bo"].reshape(1, D) @ p["wp"].T + p["bp"].reshape(1, D)).astype(f32)

    w1_t = p["w1"].T.astype(compute_dtype)                            # (D, FF)
    w2_t = p["w2"].T.astype(compute_dtype)                            # (FF, D)

    return (
        p["ln1_g"].reshape(1, D).astype(f32), p["ln1_b"].reshape(1, D).astype(f32),
        wq_t, bq, wkv_t, bkv, wop, bop,
        p["ln2_g"].reshape(1, D).astype(f32), p["ln2_b"].reshape(1, D).astype(f32),
        w1_t, p["b1"].reshape(1, -1).astype(f32), w2_t, p["b2"].reshape(1, D).astype(f32),
    )


# ------------------------------ capability probes ------------------------------------

@functools.lru_cache(maxsize=None)
def _physical_vmem_bytes():
    # Capability query only; fall back to the smallest-known VMEM (v7x, 64 MiB) so the
    # derived limit never overshoots physical VMEM if the query API is unavailable.
    try:
        return int(pltpu.get_tpu_info().vmem_capacity_bytes)
    except Exception:
        return 64 * MB


@functools.lru_cache(maxsize=None)
def _supports_single_buffered_weights():
    """Up-front feature/lowering probe: can constant-index weight BlockSpecs be
    single-buffered (pipeline_mode=pl.Buffered(1))? The real kernel build never
    swallows exceptions — only this tiny probe does."""
    if not hasattr(pl, "Buffered"):
        return False

    def _probe(w_ref, o_ref):
        o_ref[...] = w_ref[...] + 1.0

    try:
        fn = pl.pallas_call(
            _probe,
            out_shape=jax.ShapeDtypeStruct((8, 128), jnp.float32),
            grid=(2,),
            in_specs=[pl.BlockSpec((8, 128), lambda i: (0, 0),
                                   pipeline_mode=pl.Buffered(1))],
            out_specs=pl.BlockSpec((8, 128), lambda i: (0, 0)),
        )
        jax.jit(fn).lower(jnp.zeros((8, 128), jnp.float32)).compile()
        return True
    except Exception:
        return False


def _choose_q_tile(seq_len, max_tile):
    """Largest query-row tile that is a multiple of 8 and divides S (or the whole sequence)."""
    if seq_len <= max_tile:
        return seq_len
    best = 0
    for t in range(8, max_tile + 1, 8):
        if seq_len % t == 0:
            best = t
    return best if best >= min(64, max_tile) else seq_len


# ---------------------------------- wrapper ----------------------------------------

def transformer_block(x, params, n_heads, compute_dtype=jnp.bfloat16, max_q_tile=256):
    B, S, D = x.shape
    FF = params["w1"].shape[0]
    assert D % n_heads == 0, "dim must be divisible by num_heads"
    dh = D // n_heads

    prepped = _prepare_params(params, n_heads, compute_dtype)
    q_tile = _choose_q_tile(S, max_q_tile)
    nq = S // q_tile
    single_buf = _supports_single_buffered_weights()

    # ---- BlockSpecs: weights are resident (constant index); x full-seq per batch element;
    #      output is a lane-dense (tq, D) query-row tile per grid step. ----
    def const_spec(shape):
        ndim = len(shape)
        index_map = lambda b, q: (0,) * ndim
        if single_buf:
            return pl.BlockSpec(shape, index_map, pipeline_mode=pl.Buffered(1))
        return pl.BlockSpec(shape, index_map)

    in_specs = [pl.BlockSpec((1, S, D), lambda b, q: (b, 0, 0))]
    in_specs += [const_spec(tuple(a.shape)) for a in prepped]
    out_specs = pl.BlockSpec((1, q_tile, D), lambda b, q: (b, q, 0))

    scratch_shapes = [
        pltpu.VMEM((n_heads, S, dh), compute_dtype),   # K, head-major, reused across query tiles
        pltpu.VMEM((n_heads, S, dh), compute_dtype),   # V, head-major
        pltpu.VMEM((S, D), compute_dtype),             # LayerNorm1(x), reused across query tiles
    ]

    # ---- VMEM limit derived per generation: resident bytes vs physical capacity. ----
    itemsize = jnp.dtype(x.dtype).itemsize
    cbytes = jnp.dtype(compute_dtype).itemsize
    raw_weight_bytes = sum(int(a.size) * jnp.dtype(a.dtype).itemsize for a in prepped)
    weight_resident = raw_weight_bytes * (1 if single_buf else 2)
    act_bytes = 2 * S * D * itemsize + 2 * q_tile * D * itemsize            # double-buffered x / out blocks
    scratch_bytes = (2 * n_heads * S * max(dh, 128) + S * max(D, 128)) * cbytes
    transient_bytes = (n_heads * q_tile * S + q_tile * FF + 4 * q_tile * D + 2 * S * D) * 4
    needed = weight_resident + act_bytes + scratch_bytes + transient_bytes
    cap = _physical_vmem_bytes()
    vmem_limit = int(min(max(needed * 3 // 2 + 16 * MB, 48 * MB), int(cap * 0.85)))

    flops = int(B * (8 * S * D * D + 4 * S * S * D + 4 * S * D * FF))
    transcendentals = int(B * (n_heads * S * S + S * FF + 4 * S))
    bytes_accessed = int(2 * B * S * D * itemsize + raw_weight_bytes)

    kernel = functools.partial(
        transformer_block_kernel,
        n_heads=n_heads,
        q_tile=q_tile,
        use_approx_recip=(jnp.dtype(compute_dtype) != jnp.dtype(jnp.float32)),
    )

    return pl.pallas_call(
        kernel,
        out_shape=jax.ShapeDtypeStruct((B, S, D), x.dtype),
        grid=(B, nq),
        in_specs=in_specs,
        out_specs=out_specs,
        scratch_shapes=scratch_shapes,
        compiler_params=pltpu.CompilerParams(
            dimension_semantics=("parallel", "arbitrary"),
            vmem_limit_bytes=vmem_limit,
        ),
        cost_estimate=pl.CostEstimate(
            flops=flops, transcendentals=transcendentals, bytes_accessed=bytes_accessed),
    )(x, *prepped)


# ----------------------------- plain-JAX reference ---------------------------------

def transformer_block_ref(x, p, n_heads):
    def ln(h, g, b):
        mu = h.mean(-1, keepdims=True)
        var = ((h - mu) ** 2).mean(-1, keepdims=True)
        return (h - mu) / jnp.sqrt(var + 1e-6) * g + b

    B, S, D = x.shape
    dh = D // n_heads
    h = ln(x, p["ln1_g"], p["ln1_b"])
    q = h @ p["wq"].T + p["bq"]
    k = h @ p["wk"].T + p["bk"]
    v = h @ p["wv"].T + p["bv"]
    qh = q.reshape(B, S, n_heads, dh).transpose(0, 2, 1, 3)
    kh = k.reshape(B, S, n_heads, dh).transpose(0, 2, 1, 3)
    vh = v.reshape(B, S, n_heads, dh).transpose(0, 2, 1, 3)
    scores = jnp.einsum("bhqd,bhkd->bhqk", qh, kh) / math.sqrt(dh)
    probs = jax.nn.softmax(scores, axis=-1)
    o = jnp.einsum("bhqk,bhkd->bhqd", probs, vh).transpose(0, 2, 1, 3).reshape(B, S, D)
    attn = o @ p["wo"].T + p["bo"]
    h = attn @ p["wp"].T + p["bp"]
    x1 = x + h
    h = ln(x1, p["ln2_g"], p["ln2_b"])
    f = h @ p["w1"].T + p["b1"]
    f = jax.nn.gelu(f, approximate=False)
    f = f @ p["w2"].T + p["b2"]
    return x1 + f


# ------------------------------------ main ------------------------------------------

if __name__ == "__main__":
    D, H, FF = 32, 4, 64

    key = jax.random.PRNGKey(0)
    keys = jax.random.split(key, 12)

    def w(k, shape, scale=0.02):
        return (scale * jax.random.normal(k, shape)).astype(jnp.float32)

    params = {
        "ln1_g": jnp.ones((D,), jnp.float32), "ln1_b": jnp.zeros((D,), jnp.float32),
        "wq": w(keys[0], (D, D)), "bq": w(keys[1], (D,)),
        "wk": w(keys[2], (D, D)), "bk": w(keys[3], (D,)),
        "wv": w(keys[4], (D, D)), "bv": w(keys[5], (D,)),
        "wo": w(keys[6], (D, D)), "bo": w(keys[7], (D,)),
        "wp": w(keys[8], (D, D)), "bp": w(keys[9], (D,)),
        "ln2_g": jnp.ones((D,), jnp.float32), "ln2_b": jnp.zeros((D,), jnp.float32),
        "w1": w(keys[10], (FF, D)), "b1": jnp.zeros((FF,), jnp.float32),
        "w2": w(keys[11], (D, FF)), "b2": jnp.zeros((D,), jnp.float32),
    }

    # ---- test 1: single query tile (B=2, S=8) ----
    x = jax.random.normal(jax.random.PRNGKey(42), (2, 8, D), jnp.float32)
    ref = jax.block_until_ready(transformer_block_ref(x, params, n_heads=H))

    out_fp32 = jax.block_until_ready(
        transformer_block(x, params, n_heads=H, compute_dtype=jnp.float32))
    assert out_fp32.shape == x.shape and out_fp32.dtype == jnp.float32
    assert jnp.max(jnp.abs(out_fp32 - ref)) < 2e-4, "fp32 Pallas kernel mismatch vs reference"

    out_bf16 = jax.block_until_ready(
        transformer_block(x, params, n_heads=H, compute_dtype=jnp.bfloat16))
    assert out_bf16.shape == x.shape and out_bf16.dtype == jnp.float32
    assert jnp.max(jnp.abs(out_bf16 - ref)) < 2e-2, "bf16 Pallas kernel mismatch vs reference"

    # ---- test 2: multi-tile query axis (B=2, S=32, q_tile=8 -> 4 tiles per batch element) ----
    x2 = jax.random.normal(jax.random.PRNGKey(7), (2, 32, D), jnp.float32)
    ref2 = jax.block_until_ready(transformer_block_ref(x2, params, n_heads=H))

    out2_fp32 = jax.block_until_ready(
        transformer_block(x2, params, n_heads=H, compute_dtype=jnp.float32, max_q_tile=8))
    assert jnp.max(jnp.abs(out2_fp32 - ref2)) < 2e-4, "tiled fp32 Pallas kernel mismatch"

    out2_bf16 = jax.block_until_ready(
        transformer_block(x2, params, n_heads=H, compute_dtype=jnp.bfloat16, max_q_tile=8))
    assert jnp.max(jnp.abs(out2_bf16 - ref2)) < 2e-2, "tiled bf16 Pallas kernel mismatch"

    print("KERNEL_OK")
</pallas_src>

<mosaic_0001>
module attributes {stable_mosaic.version = 11 : i64} {
  func.func @transformer_block_kernel(%arg0: i32, %arg1: i32, %arg2: memref<1x8x32xf32, #tpu.memory_space<vmem>>, %arg3: memref<1x32xf32, #tpu.memory_space<vmem>>, %arg4: memref<1x32xf32, #tpu.memory_space<vmem>>, %arg5: memref<32x32xf32, #tpu.memory_space<vmem>>, %arg6: memref<1x32xf32, #tpu.memory_space<vmem>>, %arg7: memref<32x64xf32, #tpu.memory_space<vmem>>, %arg8: memref<1x64xf32, #tpu.memory_space<vmem>>, %arg9: memref<32x32xf32, #tpu.memory_space<vmem>>, %arg10: memref<1x32xf32, #tpu.memory_space<vmem>>, %arg11: memref<1x32xf32, #tpu.memory_space<vmem>>, %arg12: memref<1x32xf32, #tpu.memory_space<vmem>>, %arg13: memref<32x64xf32, #tpu.memory_space<vmem>>, %arg14: memref<1x64xf32, #tpu.memory_space<vmem>>, %arg15: memref<64x32xf32, #tpu.memory_space<vmem>>, %arg16: memref<1x32xf32, #tpu.memory_space<vmem>>, %arg17: memref<1x8x32xf32, #tpu.memory_space<vmem>>, %arg18: memref<4x8x8xf32, #tpu.memory_space<vmem>>, %arg19: memref<4x8x8xf32, #tpu.memory_space<vmem>>, %arg20: memref<8x32xf32, #tpu.memory_space<vmem>>) attributes {dimension_semantics = [#tpu.dimension_semantics<parallel>, #tpu.dimension_semantics<arbitrary>], iteration_bounds = array<i64: 2, 1>, scalar_prefetch = 0 : i64, scratch_operands = 3 : i64, tpu.core_type = #tpu.core_type<tc>, window_params = [{transform_indices = @transform_0, window_bounds = array<i64: 1, 8, 32>}, {pipeline_mode = #tpu.pipeline_mode<synchronous>, transform_indices = @transform_1, window_bounds = array<i64: 1, 32>}, {pipeline_mode = #tpu.pipeline_mode<synchronous>, transform_indices = @transform_2, window_bounds = array<i64: 1, 32>}, {pipeline_mode = #tpu.pipeline_mode<synchronous>, transform_indices = @transform_3, window_bounds = array<i64: 32, 32>}, {pipeline_mode = #tpu.pipeline_mode<synchronous>, transform_indices = @transform_4, window_bounds = array<i64: 1, 32>}, {pipeline_mode = #tpu.pipeline_mode<synchronous>, transform_indices = @transform_5, window_bounds = array<i64: 32, 64>}, {pipeline_mode = #tpu.pipeline_mode<synchronous>, transform_indices = @transform_6, window_bounds = array<i64: 1, 64>}, {pipeline_mode = #tpu.pipeline_mode<synchronous>, transform_indices = @transform_7, window_bounds = array<i64: 32, 32>}, {pipeline_mode = #tpu.pipeline_mode<synchronous>, transform_indices = @transform_8, window_bounds = array<i64: 1, 32>}, {pipeline_mode = #tpu.pipeline_mode<synchronous>, transform_indices = @transform_9, window_bounds = array<i64: 1, 32>}, {pipeline_mode = #tpu.pipeline_mode<synchronous>, transform_indices = @transform_10, window_bounds = array<i64: 1, 32>}, {pipeline_mode = #tpu.pipeline_mode<synchronous>, transform_indices = @transform_11, window_bounds = array<i64: 32, 64>}, {pipeline_mode = #tpu.pipeline_mode<synchronous>, transform_indices = @transform_12, window_bounds = array<i64: 1, 64>}, {pipeline_mode = #tpu.pipeline_mode<synchronous>, transform_indices = @transform_13, window_bounds = array<i64: 64, 32>}, {pipeline_mode = #tpu.pipeline_mode<synchronous>, transform_indices = @transform_14, window_bounds = array<i64: 1, 32>}, {transform_indices = @transform_15, window_bounds = array<i64: 1, 8, 32>}]} {
    %c0_i32 = arith.constant 0 : i32
    %0 = arith.cmpi eq, %arg1, %c0_i32 : i32
    %1 = arith.extui %0 : i1 to i32
    %c0_i32_0 = arith.constant 0 : i32
    %2 = arith.cmpi ne, %1, %c0_i32_0 : i32
    scf.if %2 {
      %c0_62 = arith.constant 0 : index
      %c0_63 = arith.constant 0 : index
      %c0_64 = arith.constant 0 : index
      %127 = vector.load %arg2[%c0_62, %c0_63, %c0_64] : memref<1x8x32xf32, #tpu.memory_space<vmem>>, vector<1x8x32xf32>
      %128 = vector.shape_cast %127 : vector<1x8x32xf32> to vector<8x32xf32>
      %c0_65 = arith.constant 0 : index
      %c0_66 = arith.constant 0 : index
      %129 = vector.load %arg3[%c0_65, %c0_66] : memref<1x32xf32, #tpu.memory_space<vmem>>, vector<1x32xf32>
      %c0_67 = arith.constant 0 : index
      %c0_68 = arith.constant 0 : index
      %130 = vector.load %arg4[%c0_67, %c0_68] : memref<1x32xf32, #tpu.memory_space<vmem>>, vector<1x32xf32>
      %cst_69 = arith.constant dense<0.000000e+00> : vector<8xf32>
      %131 = vector.multi_reduction <add>, %128, %cst_69 [1] : vector<8x32xf32> to vector<8xf32>
      %132 = vector.shape_cast %131 : vector<8xf32> to vector<8x1xf32>
      %cst_70 = arith.constant 3.200000e+01 : f32
      %133 = vector.broadcast %cst_70 : f32 to vector<8x1xf32>
      %134 = arith.divf %132, %133 : vector<8x1xf32>
      %135 = vector.broadcast %134 : vector<8x1xf32> to vector<8x32xf32>
      %136 = arith.subf %128, %135 : vector<8x32xf32>
      %137 = arith.mulf %136, %136 : vector<8x32xf32>
      %cst_71 = arith.constant dense<0.000000e+00> : vector<8xf32>
      %138 = vector.multi_reduction <add>, %137, %cst_71 [1] : vector<8x32xf32> to vector<8xf32>
      %139 = vector.shape_cast %138 : vector<8xf32> to vector<8x1xf32>
      %cst_72 = arith.constant 3.200000e+01 : f32
      %140 = vector.broadcast %cst_72 : f32 to vector<8x1xf32>
      %141 = arith.divf %139, %140 : vector<8x1xf32>
      %142 = vector.broadcast %134 : vector<8x1xf32> to vector<8x32xf32>
      %143 = arith.subf %128, %142 : vector<8x32xf32>
      %cst_73 = arith.constant 9.99999997E-7 : f32
      %144 = vector.broadcast %cst_73 : f32 to vector<8x1xf32>
      %145 = arith.addf %141, %144 : vector<8x1xf32>
      %146 = math.rsqrt %145 : vector<8x1xf32>
      %147 = vector.broadcast %146 : vector<8x1xf32> to vector<8x32xf32>
      %148 = arith.mulf %143, %147 : vector<8x32xf32>
      %149 = vector.broadcast %129 : vector<1x32xf32> to vector<8x32xf32>
      %150 = arith.mulf %148, %149 : vector<8x32xf32>
      %151 = vector.broadcast %130 : vector<1x32xf32> to vector<8x32xf32>
      %152 = arith.addf %150, %151 : vector<8x32xf32>
      %c0_74 = arith.constant 0 : index
      %c0_75 = arith.constant 0 : index
      %153 = vector.load %arg20[%c0_74, %c0_75] : memref<8x32xf32, #tpu.memory_space<vmem>>, vector<8x32xf32>
      tpu.vector_store %arg20[%c0_74, %c0_75], %152 {strides = array<i32>} : memref<8x32xf32, #tpu.memory_space<vmem>>, vector<8x32xf32>,
      %c0_76 = arith.constant 0 : index
      %c0_77 = arith.constant 0 : index
      %154 = vector.load %arg7[%c0_76, %c0_77] : memref<32x64xf32, #tpu.memory_space<vmem>>, vector<32x64xf32>
      %cst_78 = arith.constant dense<0.000000e+00> : vector<8x64xf32>
      %155 = tpu.matmul %152, %154, %cst_78 {dimension_numbers = #tpu.dot_dimension_numbers<[1], [0], [0], [1], [0, 0, 1, 1], [], []>} : vector<8x32xf32>, vector<32x64xf32>, vector<8x64xf32> -> vector<8x64xf32>
      %c0_79 = arith.constant 0 : index
      %c0_80 = arith.constant 0 : index
      %156 = vector.load %arg8[%c0_79, %c0_80] : memref<1x64xf32, #tpu.memory_space<vmem>>, vector<1x64xf32>
      %157 = vector.broadcast %156 : vector<1x64xf32> to vector<8x64xf32>
      %158 = arith.addf %155, %157 : vector<8x64xf32>
      %159 = vector.extract_strided_slice %158 {offsets = [0, 0], sizes = [8, 8], strides = [1, 1]} : vector<8x64xf32> to vector<8x8xf32>
      %c0_81 = arith.constant 0 : index
      %c0_82 = arith.constant 0 : index
      %c0_83 = arith.constant 0 : index
      %160 = vector.load %arg18[%c0_81, %c0_82, %c0_83] : memref<4x8x8xf32, #tpu.memory_space<vmem>>, vector<1x8x8xf32>
      %161 = vector.shape_cast %160 : vector<1x8x8xf32> to vector<8x8xf32>
      %162 = vector.shape_cast %159 : vector<8x8xf32> to vector<1x8x8xf32>
      tpu.vector_store %arg18[%c0_81, %c0_82, %c0_83], %162 {strides = array<i32>} : memref<4x8x8xf32, #tpu.memory_space<vmem>>, vector<1x8x8xf32>,
      %163 = vector.extract_strided_slice %158 {offsets = [0, 32], sizes = [8, 8], strides = [1, 1]} : vector<8x64xf32> to vector<8x8xf32>
      %c0_84 = arith.constant 0 : index
      %c0_85 = arith.constant 0 : index
      %c0_86 = arith.constant 0 : index
      %164 = vector.load %arg19[%c0_84, %c0_85, %c0_86] : memref<4x8x8xf32, #tpu.memory_space<vmem>>, vector<1x8x8xf32>
      %165 = vector.shape_cast %164 : vector<1x8x8xf32> to vector<8x8xf32>
      %166 = vector.shape_cast %163 : vector<8x8xf32> to vector<1x8x8xf32>
      tpu.vector_store %arg19[%c0_84, %c0_85, %c0_86], %166 {strides = array<i32>} : memref<4x8x8xf32, #tpu.memory_space<vmem>>, vector<1x8x8xf32>,
      %167 = vector.extract_strided_slice %158 {offsets = [0, 8], sizes = [8, 8], strides = [1, 1]} : vector<8x64xf32> to vector<8x8xf32>
      %c1 = arith.constant 1 : index
      %c0_87 = arith.constant 0 : index
      %c0_88 = arith.constant 0 : index
      %168 = vector.load %arg18[%c1, %c0_87, %c0_88] : memref<4x8x8xf32, #tpu.memory_space<vmem>>, vector<1x8x8xf32>
      %169 = vector.shape_cast %168 : vector<1x8x8xf32> to vector<8x8xf32>
      %170 = vector.shape_cast %167 : vector<8x8xf32> to vector<1x8x8xf32>
      tpu.vector_store %arg18[%c1, %c0_87, %c0_88], %170 {strides = array<i32>} : memref<4x8x8xf32, #tpu.memory_space<vmem>>, vector<1x8x8xf32>,
      %171 = vector.extract_strided_slice %158 {offsets = [0, 40], sizes = [8, 8], strides = [1, 1]} : vector<8x64xf32> to vector<8x8xf32>
      %c1_89 = arith.constant 1 : index
      %c0_90 = arith.constant 0 : index
      %c0_91 = arith.constant 0 : index
      %172 = vector.load %arg19[%c1_89, %c0_90, %c0_91] : memref<4x8x8xf32, #tpu.memory_space<vmem>>, vector<1x8x8xf32>
      %173 = vector.shape_cast %172 : vector<1x8x8xf32> to vector<8x8xf32>
      %174 = vector.shape_cast %171 : vector<8x8xf32> to vector<1x8x8xf32>
      tpu.vector_store %arg19[%c1_89, %c0_90, %c0_91], %174 {strides = array<i32>} : memref<4x8x8xf32, #tpu.memory_space<vmem>>, vector<1x8x8xf32>,
      %175 = vector.extract_strided_slice %158 {offsets = [0, 16], sizes = [8, 8], strides = [1, 1]} : vector<8x64xf32> to vector<8x8xf32>
      %c2 = arith.constant 2 : index
      %c0_92 = arith.constant 0 : index
      %c0_93 = arith.constant 0 : index
      %176 = vector.load %arg18[%c2, %c0_92, %c0_93] : memref<4x8x8xf32, #tpu.memory_space<vmem>>, vector<1x8x8xf32>
      %177 = vector.shape_cast %176 : vector<1x8x8xf32> to vector<8x8xf32>
      %178 = vector.shape_cast %175 : vector<8x8xf32> to vector<1x8x8xf32>
      tpu.vector_store %arg18[%c2, %c0_92, %c0_93], %178 {strides = array<i32>} : memref<4x8x8xf32, #tpu.memory_space<vmem>>, vector<1x8x8xf32>,
      %179 = vector.extract_strided_slice %158 {offsets = [0, 48], sizes = [8, 8], strides = [1, 1]} : vector<8x64xf32> to vector<8x8xf32>
      %c2_94 = arith.constant 2 : index
      %c0_95 = arith.constant 0 : index
      %c0_96 = arith.constant 0 : index
      %180 = vector.load %arg19[%c2_94, %c0_95, %c0_96] : memref<4x8x8xf32, #tpu.memory_space<vmem>>, vector<1x8x8xf32>
      %181 = vector.shape_cast %180 : vector<1x8x8xf32> to vector<8x8xf32>
      %182 = vector.shape_cast %179 : vector<8x8xf32> to vector<1x8x8xf32>
      tpu.vector_store %arg19[%c2_94, %c0_95, %c0_96], %182 {strides = array<i32>} : memref<4x8x8xf32, #tpu.memory_space<vmem>>, vector<1x8x8xf32>,
      %183 = vector.extract_strided_slice %158 {offsets = [0, 24], sizes = [8, 8], strides = [1, 1]} : vector<8x64xf32> to vector<8x8xf32>
      %c3 = arith.constant 3 : index
      %c0_97 = arith.constant 0 : index
      %c0_98 = arith.constant 0 : index
      %184 = vector.load %arg18[%c3, %c0_97, %c0_98] : memref<4x8x8xf32, #tpu.memory_space<vmem>>, vector<1x8x8xf32>
      %185 = vector.shape_cast %184 : vector<1x8x8xf32> to vector<8x8xf32>
      %186 = vector.shape_cast %183 : vector<8x8xf32> to vector<1x8x8xf32>
      tpu.vector_store %arg18[%c3, %c0_97, %c0_98], %186 {strides = array<i32>} : memref<4x8x8xf32, #tpu.memory_space<vmem>>, vector<1x8x8xf32>,
      %187 = vector.extract_strided_slice %158 {offsets = [0, 56], sizes = [8, 8], strides = [1, 1]} : vector<8x64xf32> to vector<8x8xf32>
      %c3_99 = arith.constant 3 : index
      %c0_100 = arith.constant 0 : index
      %c0_101 = arith.constant 0 : index
      %188 = vector.load %arg19[%c3_99, %c0_100, %c0_101] : memref<4x8x8xf32, #tpu.memory_space<vmem>>, vector<1x8x8xf32>
      %189 = vector.shape_cast %188 : vector<1x8x8xf32> to vector<8x8xf32>
      %190 = vector.shape_cast %187 : vector<8x8xf32> to vector<1x8x8xf32>
      tpu.vector_store %arg19[%c3_99, %c0_100, %c0_101], %190 {strides = array<i32>} : memref<4x8x8xf32, #tpu.memory_space<vmem>>, vector<1x8x8xf32>,
    } else {
    }
    %c0 = arith.constant 0 : index
    %c0_1 = arith.constant 0 : index
    %c0_2 = arith.constant 0 : index
    %3 = vector.load %arg2[%c0, %c0_1, %c0_2] : memref<1x8x32xf32, #tpu.memory_space<vmem>>, vector<1x8x32xf32>
    %4 = vector.shape_cast %3 : vector<1x8x32xf32> to vector<8x32xf32>
    %c0_3 = arith.constant 0 : index
    %c0_4 = arith.constant 0 : index
    %5 = vector.load %arg20[%c0_3, %c0_4] : memref<8x32xf32, #tpu.memory_space<vmem>>, vector<8x32xf32>
    %c0_5 = arith.constant 0 : index
    %c0_6 = arith.constant 0 : index
    %6 = vector.load %arg5[%c0_5, %c0_6] : memref<32x32xf32, #tpu.memory_space<vmem>>, vector<32x32xf32>
    %cst = arith.constant dense<0.000000e+00> : vector<8x32xf32>
    %7 = tpu.matmul %5, %6, %cst {dimension_numbers = #tpu.dot_dimension_numbers<[1], [0], [0], [1], [0, 0, 1, 1], [], []>} : vector<8x32xf32>, vector<32x32xf32>, vector<8x32xf32> -> vector<8x32xf32>
    %c0_7 = arith.constant 0 : index
    %c0_8 = arith.constant 0 : index
    %8 = vector.load %arg6[%c0_7, %c0_8] : memref<1x32xf32, #tpu.memory_space<vmem>>, vector<1x32xf32>
    %9 = vector.broadcast %8 : vector<1x32xf32> to vector<8x32xf32>
    %10 = arith.addf %7, %9 : vector<8x32xf32>
    %11 = vector.extract_strided_slice %10 {offsets = [0, 0], sizes = [8, 8], strides = [1, 1]} : vector<8x32xf32> to vector<8x8xf32>
    %12 = vector.extract_strided_slice %10 {offsets = [0, 8], sizes = [8, 8], strides = [1, 1]} : vector<8x32xf32> to vector<8x8xf32>
    %13 = vector.extract_strided_slice %10 {offsets = [0, 16], sizes = [8, 8], strides = [1, 1]} : vector<8x32xf32> to vector<8x8xf32>
    %14 = vector.extract_strided_slice %10 {offsets = [0, 24], sizes = [8, 8], strides = [1, 1]} : vector<8x32xf32> to vector<8x8xf32>
    %15 = vector.shape_cast %11 : vector<8x8xf32> to vector<1x8x8xf32>
    %16 = vector.shape_cast %12 : vector<8x8xf32> to vector<1x8x8xf32>
    %17 = vector.shape_cast %13 : vector<8x8xf32> to vector<1x8x8xf32>
    %18 = vector.shape_cast %14 : vector<8x8xf32> to vector<1x8x8xf32>
    %19 = tpu.concatenate %15, %16, %17, %18 in 0 : vector<1x8x8xf32>, vector<1x8x8xf32>, vector<1x8x8xf32>, vector<1x8x8xf32> -> vector<4x8x8xf32>
    %c0_9 = arith.constant 0 : index
    %c0_10 = arith.constant 0 : index
    %c0_11 = arith.constant 0 : index
    %20 = vector.load %arg18[%c0_9, %c0_10, %c0_11] : memref<4x8x8xf32, #tpu.memory_space<vmem>>, vector<4x8x8xf32>
    "tpu.trace_start"() <{level = 10 : i32, message = "hqe,hke->hqk"}> : () -> ()
    %cst_12 = arith.constant dense<0.000000e+00> : vector<4x8x8xf32>
    %21 = tpu.matmul %19, %20, %cst_12 {dimension_numbers = #tpu.dot_dimension_numbers<[2], [2], [1], [1], [0, 0, 0, 1, 1, 1], [0], [0]>} : vector<4x8x8xf32>, vector<4x8x8xf32>, vector<4x8x8xf32> -> vector<4x8x8xf32>
    "tpu.trace_stop"() : () -> ()
    %cst_13 = arith.constant dense<0xFF800000> : vector<4x8xf32>
    %22 = vector.multi_reduction <maximumf>, %21, %cst_13 [2] : vector<4x8x8xf32> to vector<4x8xf32>
    %23 = vector.shape_cast %22 : vector<4x8xf32> to vector<4x8x1xf32>
    %24 = vector.broadcast %23 : vector<4x8x1xf32> to vector<4x8x8xf32>
    %25 = arith.subf %21, %24 : vector<4x8x8xf32>
    %26 = math.exp %25 : vector<4x8x8xf32>
    %cst_14 = arith.constant dense<0.000000e+00> : vector<4x8xf32>
    %27 = vector.multi_reduction <add>, %26, %cst_14 [2] : vector<4x8x8xf32> to vector<4x8xf32>
    %28 = vector.shape_cast %27 : vector<4x8xf32> to vector<4x8x1xf32>
    %29 = vector.broadcast %28 : vector<4x8x1xf32> to vector<4x8x8xf32>
    %30 = arith.divf %26, %29 : vector<4x8x8xf32>
    %c0_15 = arith.constant 0 : index
    %c0_16 = arith.constant 0 : index
    %c0_17 = arith.constant 0 : index
    %31 = vector.load %arg19[%c0_15, %c0_16, %c0_17] : memref<4x8x8xf32, #tpu.memory_space<vmem>>, vector<4x8x8xf32>
    "tpu.trace_start"() <{level = 10 : i32, message = "hqk,hke->hqe"}> : () -> ()
    %cst_18 = arith.constant dense<0.000000e+00> : vector<4x8x8xf32>
    %32 = tpu.matmul %30, %31, %cst_18 {dimension_numbers = #tpu.dot_dimension_numbers<[2], [1], [1], [2], [0, 0, 0, 1, 1, 2], [0], [0]>} : vector<4x8x8xf32>, vector<4x8x8xf32>, vector<4x8x8xf32> -> vector<4x8x8xf32>
    "tpu.trace_stop"() : () -> ()
    %33 = vector.extract_strided_slice %32 {offsets = [0, 0, 0], sizes = [1, 8, 8], strides = [1, 1, 1]} : vector<4x8x8xf32> to vector<1x8x8xf32>
    %34 = vector.shape_cast %33 : vector<1x8x8xf32> to vector<8x8xf32>
    %35 = vector.extract_strided_slice %32 {offsets = [1, 0, 0], sizes = [1, 8, 8], strides = [1, 1, 1]} : vector<4x8x8xf32> to vector<1x8x8xf32>
    %36 = vector.shape_cast %35 : vector<1x8x8xf32> to vector<8x8xf32>
    %37 = vector.extract_strided_slice %32 {offsets = [2, 0, 0], sizes = [1, 8, 8], strides = [1, 1, 1]} : vector<4x8x8xf32> to vector<1x8x8xf32>
    %38 = vector.shape_cast %37 : vector<1x8x8xf32> to vector<8x8xf32>
    %39 = vector.extract_strided_slice %32 {offsets = [3, 0, 0], sizes = [1, 8, 8], strides = [1, 1, 1]} : vector<4x8x8xf32> to vector<1x8x8xf32>
    %40 = vector.shape_cast %39 : vector<1x8x8xf32> to vector<8x8xf32>
    %41 = tpu.concatenate %34, %36, %38, %40 in 1 : vector<8x8xf32>, vector<8x8xf32>, vector<8x8xf32>, vector<8x8xf32> -> vector<8x32xf32>
    %c0_19 = arith.constant 0 : index
    %c0_20 = arith.constant 0 : index
    %42 = vector.load %arg9[%c0_19, %c0_20] : memref<32x32xf32, #tpu.memory_space<vmem>>, vector<32x32xf32>
    %cst_21 = arith.constant dense<0.000000e+00> : vector<8x32xf32>
    %43 = tpu.matmul %41, %42, %cst_21 {dimension_numbers = #tpu.dot_dimension_numbers<[1], [0], [0], [1], [0, 0, 1, 1], [], []>} : vector<8x32xf32>, vector<32x32xf32>, vector<8x32xf32> -> vector<8x32xf32>
    %c0_22 = arith.constant 0 : index
    %c0_23 = arith.constant 0 : index
    %44 = vector.load %arg10[%c0_22, %c0_23] : memref<1x32xf32, #tpu.memory_space<vmem>>, vector<1x32xf32>
    %45 = vector.broadcast %44 : vector<1x32xf32> to vector<8x32xf32>
    %46 = arith.addf %43, %45 : vector<8x32xf32>
    %47 = arith.addf %4, %46 : vector<8x32xf32>
    %c0_24 = arith.constant 0 : index
    %c0_25 = arith.constant 0 : index
    %48 = vector.load %arg11[%c0_24, %c0_25] : memref<1x32xf32, #tpu.memory_space<vmem>>, vector<1x32xf32>
    %c0_26 = arith.constant 0 : index
    %c0_27 = arith.constant 0 : index
    %49 = vector.load %arg12[%c0_26, %c0_27] : memref<1x32xf32, #tpu.memory_space<vmem>>, vector<1x32xf32>
    %cst_28 = arith.constant dense<0.000000e+00> : vector<8xf32>
    %50 = vector.multi_reduction <add>, %47, %cst_28 [1] : vector<8x32xf32> to vector<8xf32>
    %51 = vector.shape_cast %50 : vector<8xf32> to vector<8x1xf32>
    %cst_29 = arith.constant 3.200000e+01 : f32
    %52 = vector.broadcast %cst_29 : f32 to vector<8x1xf32>
    %53 = arith.divf %51, %52 : vector<8x1xf32>
    %54 = vector.broadcast %53 : vector<8x1xf32> to vector<8x32xf32>
    %55 = arith.subf %47, %54 : vector<8x32xf32>
    %56 = arith.mulf %55, %55 : vector<8x32xf32>
    %cst_30 = arith.constant dense<0.000000e+00> : vector<8xf32>
    %57 = vector.multi_reduction <add>, %56, %cst_30 [1] : vector<8x32xf32> to vector<8xf32>
    %58 = vector.shape_cast %57 : vector<8xf32> to vector<8x1xf32>
    %cst_31 = arith.constant 3.200000e+01 : f32
    %59 = vector.broadcast %cst_31 : f32 to vector<8x1xf32>
    %60 = arith.divf %58, %59 : vector<8x1xf32>
    %61 = vector.broadcast %53 : vector<8x1xf32> to vector<8x32xf32>
    %62 = arith.subf %47, %61 : vector<8x32xf32>
    %cst_32 = arith.constant 9.99999997E-7 : f32
    %63 = vector.broadcast %cst_32 : f32 to vector<8x1xf32>
    %64 = arith.addf %60, %63 : vector<8x1xf32>
    %65 = math.rsqrt %64 : vector<8x1xf32>
    %66 = vector.broadcast %65 : vector<8x1xf32> to vector<8x32xf32>
    %67 = arith.mulf %62, %66 : vector<8x32xf32>
    %68 = vector.broadcast %48 : vector<1x32xf32> to vector<8x32xf32>
    %69 = arith.mulf %67, %68 : vector<8x32xf32>
    %70 = vector.broadcast %49 : vector<1x32xf32> to vector<8x32xf32>
    %71 = arith.addf %69, %70 : vector<8x32xf32>
    %c0_33 = arith.constant 0 : index
    %c0_34 = arith.constant 0 : index
    %72 = vector.load %arg13[%c0_33, %c0_34] : memref<32x64xf32, #tpu.memory_space<vmem>>, vector<32x64xf32>
    %cst_35 = arith.constant dense<0.000000e+00> : vector<8x64xf32>
    %73 = tpu.matmul %71, %72, %cst_35 {dimension_numbers = #tpu.dot_dimension_numbers<[1], [0], [0], [1], [0, 0, 1, 1], [], []>} : vector<8x32xf32>, vector<32x64xf32>, vector<8x64xf32> -> vector<8x64xf32>
    %c0_36 = arith.constant 0 : index
    %c0_37 = arith.constant 0 : index
    %74 = vector.load %arg14[%c0_36, %c0_37] : memref<1x64xf32, #tpu.memory_space<vmem>>, vector<1x64xf32>
    %75 = vector.broadcast %74 : vector<1x64xf32> to vector<8x64xf32>
    %76 = arith.addf %73, %75 : vector<8x64xf32>
    %cst_38 = arith.constant 5.000000e-01 : f32
    %77 = vector.broadcast %cst_38 : f32 to vector<8x64xf32>
    %78 = arith.mulf %77, %76 : vector<8x64xf32>
    %cst_39 = arith.constant 0.707106769 : f32
    %79 = vector.broadcast %cst_39 : f32 to vector<8x64xf32>
    %80 = arith.mulf %76, %79 : vector<8x64xf32>
    %cst_40 = arith.constant 0.000000e+00 : f32
    %81 = vector.broadcast %cst_40 : f32 to vector<8x64xf32>
    %82 = arith.cmpf oge, %80, %81 : vector<8x64xf32>
    %cst_41 = arith.constant 1.000000e+00 : f32
    %cst_42 = arith.constant -1.000000e+00 : f32
    %83 = vector.broadcast %cst_41 : f32 to vector<8x64xf32>
    %84 = vector.broadcast %cst_42 : f32 to vector<8x64xf32>
    %85 = arith.select %82, %83, %84 : vector<8x64xi1>, vector<8x64xf32>
    %86 = math.absf %80 : vector<8x64xf32>
    %cst_43 = arith.constant 0.327591091 : f32
    %87 = vector.broadcast %cst_43 : f32 to vector<8x64xf32>
    %88 = arith.mulf %87, %86 : vector<8x64xf32>
    %cst_44 = arith.constant 1.000000e+00 : f32
    %89 = vector.broadcast %cst_44 : f32 to vector<8x64xf32>
    %90 = arith.addf %89, %88 : vector<8x64xf32>
    %cst_45 = arith.constant 1.000000e+00 : f32
    %91 = vector.broadcast %cst_45 : f32 to vector<8x64xf32>
    %92 = arith.divf %91, %90 : vector<8x64xf32>
    %cst_46 = arith.constant 1.06140542 : f32
    %93 = vector.broadcast %cst_46 : f32 to vector<8x64xf32>
    %94 = arith.mulf %93, %92 : vector<8x64xf32>
    %cst_47 = arith.constant -1.45315206 : f32
    %95 = vector.broadcast %cst_47 : f32 to vector<8x64xf32>
    %96 = arith.addf %94, %95 : vector<8x64xf32>
    %97 = arith.mulf %96, %92 : vector<8x64xf32>
    %cst_48 = arith.constant 1.42141378 : f32
    %98 = vector.broadcast %cst_48 : f32 to vector<8x64xf32>
    %99 = arith.addf %97, %98 : vector<8x64xf32>
    %100 = arith.mulf %99, %92 : vector<8x64xf32>
    %cst_49 = arith.constant -0.284496725 : f32
    %101 = vector.broadcast %cst_49 : f32 to vector<8x64xf32>
    %102 = arith.addf %100, %101 : vector<8x64xf32>
    %103 = arith.mulf %102, %92 : vector<8x64xf32>
    %cst_50 = arith.constant 0.254829586 : f32
    %104 = vector.broadcast %cst_50 : f32 to vector<8x64xf32>
    %105 = arith.addf %103, %104 : vector<8x64xf32>
    %106 = arith.mulf %105, %92 : vector<8x64xf32>
    %cst_51 = arith.constant 0.000000e+00 : f32
    %107 = vector.broadcast %cst_51 : f32 to vector<8x64xf32>
    %108 = arith.subf %107, %86 : vector<8x64xf32>
    %109 = arith.mulf %108, %86 : vector<8x64xf32>
    %110 = math.exp %109 : vector<8x64xf32>
    %111 = arith.mulf %106, %110 : vector<8x64xf32>
    %cst_52 = arith.constant 1.000000e+00 : f32
    %112 = vector.broadcast %cst_52 : f32 to vector<8x64xf32>
    %113 = arith.subf %112, %111 : vector<8x64xf32>
    %114 = arith.mulf %85, %113 : vector<8x64xf32>
    %cst_53 = arith.constant 1.000000e+00 : f32
    %115 = vector.broadcast %cst_53 : f32 to vector<8x64xf32>
    %116 = arith.addf %115, %114 : vector<8x64xf32>
    %117 = arith.mulf %78, %116 : vector<8x64xf32>
    %c0_54 = arith.constant 0 : index
    %c0_55 = arith.constant 0 : index
    %118 = vector.load %arg15[%c0_54, %c0_55] : memref<64x32xf32, #tpu.memory_space<vmem>>, vector<64x32xf32>
    %cst_56 = arith.constant dense<0.000000e+00> : vector<8x32xf32>
    %119 = tpu.matmul %117, %118, %cst_56 {dimension_numbers = #tpu.dot_dimension_numbers<[1], [0], [0], [1], [0, 0, 1, 1], [], []>} : vector<8x64xf32>, vector<64x32xf32>, vector<8x32xf32> -> vector<8x32xf32>
    %c0_57 = arith.constant 0 : index
    %c0_58 = arith.constant 0 : index
    %120 = vector.load %arg16[%c0_57, %c0_58] : memref<1x32xf32, #tpu.memory_space<vmem>>, vector<1x32xf32>
    %121 = vector.broadcast %120 : vector<1x32xf32> to vector<8x32xf32>
    %122 = arith.addf %119, %121 : vector<8x32xf32>
    %123 = arith.addf %47, %122 : vector<8x32xf32>
    %c0_59 = arith.constant 0 : index
    %c0_60 = arith.constant 0 : index
    %c0_61 = arith.constant 0 : index
    %124 = vector.load %arg17[%c0_59, %c0_60, %c0_61] : memref<1x8x32xf32, #tpu.memory_space<vmem>>, vector<1x8x32xf32>
    %125 = vector.shape_cast %124 : vector<1x8x32xf32> to vector<8x32xf32>
    %126 = vector.shape_cast %123 : vector<8x32xf32> to vector<1x8x32xf32>
    tpu.vector_store %arg17[%c0_59, %c0_60, %c0_61], %126 {strides = array<i32>} : memref<1x8x32xf32, #tpu.memory_space<vmem>>, vector<1x8x32xf32>,
    return
  }
  func.func @transform_0(%arg0: i32, %arg1: i32) -> (i32, i32, i32) {
    %c0_i32 = arith.constant 0 : i32
    %c0_i32_0 = arith.constant 0 : i32
    %c0_i32_1 = arith.constant 0 : i32
    return %arg0, %c0_i32, %c0_i32_0 : i32, i32, i32
  }
  func.func @transform_1(%arg0: i32, %arg1: i32) -> (i32, i32) {
    %c0_i32 = arith.constant 0 : i32
    %c0_i32_0 = arith.constant 0 : i32
    %c0_i32_1 = arith.constant 0 : i32
    return %c0_i32, %c0_i32_0 : i32, i32
  }
  func.func @transform_2(%arg0: i32, %arg1: i32) -> (i32, i32) {
    %c0_i32 = arith.constant 0 : i32
    %c0_i32_0 = arith.constant 0 : i32
    %c0_i32_1 = arith.constant 0 : i32
    return %c0_i32, %c0_i32_0 : i32, i32
  }
  func.func @transform_3(%arg0: i32, %arg1: i32) -> (i32, i32) {
    %c0_i32 = arith.constant 0 : i32
    %c0_i32_0 = arith.constant 0 : i32
    %c0_i32_1 = arith.constant 0 : i32
    return %c0_i32, %c0_i32_0 : i32, i32
  }
  func.func @transform_4(%arg0: i32, %arg1: i32) -> (i32, i32) {
    %c0_i32 = arith.constant 0 : i32
    %c0_i32_0 = arith.constant 0 : i32
    %c0_i32_1 = arith.constant 0 : i32
    return %c0_i32, %c0_i32_0 : i32, i32
  }
  func.func @transform_5(%arg0: i32, %arg1: i32) -> (i32, i32) {
    %c0_i32 = arith.constant 0 : i32
    %c0_i32_0 = arith.constant 0 : i32
    %c0_i32_1 = arith.constant 0 : i32
    return %c0_i32, %c0_i32_0 : i32, i32
  }
  func.func @transform_6(%arg0: i32, %arg1: i32) -> (i32, i32) {
    %c0_i32 = arith.constant 0 : i32
    %c0_i32_0 = arith.constant 0 : i32
    %c0_i32_1 = arith.constant 0 : i32
    return %c0_i32, %c0_i32_0 : i32, i32
  }
  func.func @transform_7(%arg0: i32, %arg1: i32) -> (i32, i32) {
    %c0_i32 = arith.constant 0 : i32
    %c0_i32_0 = arith.constant 0 : i32
    %c0_i32_1 = arith.constant 0 : i32
    return %c0_i32, %c0_i32_0 : i32, i32
  }
  func.func @transform_8(%arg0: i32, %arg1: i32) -> (i32, i32) {
    %c0_i32 = arith.constant 0 : i32
    %c0_i32_0 = arith.constant 0 : i32
    %c0_i32_1 = arith.constant 0 : i32
    return %c0_i32, %c0_i32_0 : i32, i32
  }
  func.func @transform_9(%arg0: i32, %arg1: i32) -> (i32, i32) {
    %c0_i32 = arith.constant 0 : i32
    %c0_i32_0 = arith.constant 0 : i32
    %c0_i32_1 = arith.constant 0 : i32
    return %c0_i32, %c0_i32_0 : i32, i32
  }
  func.func @transform_10(%arg0: i32, %arg1: i32) -> (i32, i32) {
    %c0_i32 = arith.constant 0 : i32
    %c0_i32_0 = arith.constant 0 : i32
    %c0_i32_1 = arith.constant 0 : i32
    return %c0_i32, %c0_i32_0 : i32, i32
  }
  func.func @transform_11(%arg0: i32, %arg1: i32) -> (i32, i32) {
    %c0_i32 = arith.constant 0 : i32
    %c0_i32_0 = arith.constant 0 : i32
    %c0_i32_1 = arith.constant 0 : i32
    return %c0_i32, %c0_i32_0 : i32, i32
  }
  func.func @transform_12(%arg0: i32, %arg1: i32) -> (i32, i32) {
    %c0_i32 = arith.constant 0 : i32
    %c0_i32_0 = arith.constant 0 : i32
    %c0_i32_1 = arith.constant 0 : i32
    return %c0_i32, %c0_i32_0 : i32, i32
  }
  func.func @transform_13(%arg0: i32, %arg1: i32) -> (i32, i32) {
    %c0_i32 = arith.constant 0 : i32
    %c0_i32_0 = arith.constant 0 : i32
    %c0_i32_1 = arith.constant 0 : i32
    return %c0_i32, %c0_i32_0 : i32, i32
  }
  func.func @transform_14(%arg0: i32, %arg1: i32) -> (i32, i32) {
    %c0_i32 = arith.constant 0 : i32
    %c0_i32_0 = arith.constant 0 : i32
    %c0_i32_1 = arith.constant 0 : i32
    return %c0_i32, %c0_i32_0 : i32, i32
  }
  func.func @transform_15(%arg0: i32, %arg1: i32) -> (i32, i32, i32) {
    %c0_i32 = arith.constant 0 : i32
    %c0_i32_0 = arith.constant 0 : i32
    return %arg0, %arg1, %c0_i32 : i32, i32, i32
  }
}

</mosaic_0001>

<llo_original>
// kernel: tpu_custom_call.1
$region0: #{tpu_custom_call.1}
  #allocation0 [shape = 'u32[]', space=smem, size = 0x4, offset = 0x4, fixed_abs, tag = 'smem constant byte address 0x4 - core index']
  #allocation1 [shape = 'u32[144,128]{1,0:T(1,128)}', space=vmem, size = 0x12000, scoped, tag = 'internal scratch']
  #allocation2 [shape = 'f32[4,8,8]{2,1,0:T(8,128)}', space=vmem, size = 0x4000, scoped, tag = 'scratch operand']
  #allocation3 [shape = 'f32[4,8,8]{2,1,0:T(8,128)}', space=vmem, size = 0x4000, scoped, tag = 'scratch operand']
  #allocation4 [shape = 'f32[8,32]{1,0:T(8,128)}', space=vmem, size = 0x1000, scoped, tag = 'scratch operand']
  %s0 = inlined_call_operand.hbm [shape: f32[2,8,32], index: 0, kind: input, shape index: {}]
  %s1 = inlined_call_operand.vmem [shape: f32[1,32], index: 1, kind: input, shape index: {}]
  %s2 = inlined_call_operand.vmem [shape: f32[1,32], index: 2, kind: input, shape index: {}]
  %s3 = inlined_call_operand.vmem [shape: f32[32,32], index: 3, kind: input, shape index: {}]
  %s4 = inlined_call_operand.vmem [shape: f32[1,32], index: 4, kind: input, shape index: {}]
  %s5 = inlined_call_operand.vmem [shape: f32[32,64], index: 5, kind: input, shape index: {}]
  %s6 = inlined_call_operand.vmem [shape: f32[1,64], index: 6, kind: input, shape index: {}]
  %s7 = inlined_call_operand.vmem [shape: f32[32,32], index: 7, kind: input, shape index: {}]
  %s8 = inlined_call_operand.vmem [shape: f32[1,32], index: 8, kind: input, shape index: {}]
  %s9 = inlined_call_operand.vmem [shape: f32[1,32], index: 9, kind: input, shape index: {}]
  %s10 = inlined_call_operand.vmem [shape: f32[1,32], index: 10, kind: input, shape index: {}]
  %s11 = inlined_call_operand.hbm [shape: f32[32,64], index: 11, kind: input, shape index: {}]
  %s12 = inlined_call_operand.vmem [shape: f32[1,64], index: 12, kind: input, shape index: {}]
  %s13 = inlined_call_operand.vmem [shape: f32[64,32], index: 13, kind: input, shape index: {}]
  %s14 = inlined_call_operand.vmem [shape: f32[1,32], index: 14, kind: input, shape index: {}]
  %s15 = inlined_call_operand.hbm [shape: f32[2,8,32], index: 15, kind: output, shape index: {}]
  %s16 = sld [smem:[#allocation0]]
  $region105: #{tpu_custom_call.1} parent=0
    _
  %s18 = ssub.s32 1, %s16
  %s19 = scalar_select 0, %s18, %s16
  $region1: #{tpu_custom_call.1} parent=0
    #allocation5 [shape = 'u8[8192]{0}', space=vmem, size = 0x2000, scoped, tag = 'input window, operand 0']
    #allocation6 [shape = 's32[2]{0}', space=sflag, size = 0x8, scoped, tag = 'scoped memory for tpu_custom_call.1']
    #allocation7 [shape = 's32[2]{0}', space=sflag, size = 0x8, scoped, tag = 'scoped memory for tpu_custom_call.1']
    #allocation8 [shape = 'u8[16384]{0}', space=vmem, size = 0x4000, scoped, tag = 'input window, operand 11, single buffered']
    #allocation9 [shape = 's32[1]{0}', space=sflag, size = 0x4, scoped, tag = 'scoped memory for tpu_custom_call.1']
    #allocation10 [shape = 'u8[8192]{0}', space=vmem, size = 0x2000, scoped, tag = 'output window, operand 0']
    %20 = vsyncpa [#allocation6], 0
    %s21 = scalar_lea.sflag [#allocation6], 1
    %22 = vsyncpa %s21, 0
    %23 = vsyncpa [#allocation9], 0
    %24 = vsyncpa [#allocation7], 0
    %s25 = scalar_lea.sflag [#allocation7], 1
    %26 = vsyncpa %s25, 0
    loop: start=0, step=1, limit=4
    $region2: #{tpu_custom_call.1} parent=1 // loop_pre_header
      _
    $region3: #{tpu_custom_call.1} parent=1 // loop_header
      %s28 = sphi 0, %s32
      %p29 = scmp.ge.s32.totalorder %s28, 4
      %s35 = sphi 0, %s47
      %s36 = sphi 0, %s43
      %s37 = sphi 0, %s35
      %s38 = sphi 0, %s36
      %s39 = sphi 0, %s37
      %s40 = sphi 0, %s38
      %s50 = sphi 0, %s52
      %s53 = sphi 0, %s50
      %s54 = sphi 0, %s53
      %s70 = sphi 0, %s54
      %s74 = sphi 0, %s74
      %s76 = sphi 0, %s74
      %s77 = sphi 0, %s76
      %s91 = sphi 0, %s77
      %s95 = sphi 0, %s95
      %s97 = sphi 0, %s95
      %s98 = sphi 0, %s97
      %s112 = sphi 0, %s98
      %s116 = sphi 0, %s116
      %s118 = sphi 0, %s116
      %s119 = sphi 0, %s118
      %s133 = sphi 0, %s119
      %s137 = sphi 0, %s137
      %s139 = sphi 0, %s137
      %s140 = sphi 0, %s139
      %s154 = sphi 0, %s140
      %s158 = sphi 0, %s158
      %s160 = sphi 0, %s158
      %s161 = sphi 0, %s160
      %s175 = sphi 0, %s161
      %s179 = sphi 0, %s179
      %s181 = sphi 0, %s179
      %s182 = sphi 0, %s181
      %s196 = sphi 0, %s182
      %s200 = sphi 0, %s200
      %s202 = sphi 0, %s200
      %s203 = sphi 0, %s202
      %s217 = sphi 0, %s203
      %s221 = sphi 0, %s221
      %s223 = sphi 0, %s221
      %s224 = sphi 0, %s223
      %s238 = sphi 0, %s224
      %s242 = sphi 0, %s242
      %s244 = sphi 0, %s242
      %s245 = sphi 0, %s244
      %s259 = sphi 0, %s245
      %s263 = sphi 0, %s263
      %s265 = sphi 0, %s263
      %s266 = sphi 0, %s265
      %s280 = sphi 0, %s266
      %s284 = sphi 0, %s284
      %s286 = sphi 0, %s284
      %s287 = sphi 0, %s286
      %s301 = sphi 0, %s287
      %s305 = sphi 0, %s305
      %s307 = sphi 0, %s305
      %s308 = sphi 0, %s307
      %s322 = sphi 0, %s308
      %s326 = sphi 0, %s326
      %s328 = sphi 0, %s326
      %s329 = sphi 0, %s328
      %s343 = sphi 0, %s329
      %s347 = sphi 0, %s347
      %s349 = sphi 0, %s347
      %s350 = sphi 0, %s349
      %s364 = sphi 0, %s350
      %s372 = sphi 0, %s374
      %s375 = sphi 0, %s372
      %s376 = sphi 0, %s375
      %s392 = sphi 0, %s376
    $region4: #{tpu_custom_call.1} parent=1 // loop_header_branch
      %31 = sbr.rel (%p29) target = $region8
    $region5: #{tpu_custom_call.1} parent=1 // loop_body
      %s33 = ssub.s32 %s28, 1
      %s34 = ssub.s32 %s28, 2
      %s41 = sadd.s32 1, %s36
      %p42 = scmp.ge.s32.totalorder %s41, 1
      %s43 = scalar_select %p42, 0, %s41
      %s44 = sadd.s32 1, %s35
      %s45 = scalar_select %p42, %s44, %s35
      %p46 = scmp.ge.s32.totalorder %s45, 2
      %s47 = scalar_select %p46, 0, %s45
      %s48 = ssub.s32 %s35, %s47
      %p49 = scmp.eq.s32.totalorder %s48, 0
      %s51 = sadd.s32 %s50, 1
      %s52 = scalar_select %p49, %s50, %s51
      %p55 = pneg %p49
      %p56 = scmp.eq.s32.totalorder %s28, 1
      %p57 = por %p55, %p56
      %p58 = scmp.ne.s32.totalorder %s50, %s53
      %p59 = scmp.eq.s32.totalorder %s28, 0
      %p60 = por %p58, %p59
      %p61 = scmp.ne.s32.totalorder %s50, %s53
      %p62 = scmp.eq.s32.totalorder %s33, 1
      %p63 = por %p61, %p62
      %p64 = scmp.ne.s32.totalorder %s53, %s54
      %p65 = scmp.eq.s32.totalorder %s33, 0
      %p66 = por %p64, %p65
      %p67 = scmp.ne.s32.totalorder %s53, %s54
      %p68 = scmp.eq.s32.totalorder %s34, 1
      %p69 = por %p67, %p68
      %p71 = scmp.ne.s32.totalorder %s54, %s70
      %p72 = scmp.eq.s32.totalorder %s34, 0
      %p73 = por %p71, %p72
      %s75 = sadd.s32 %s74, 1
      %p78 = scmp.eq.s32.totalorder %s28, 1
      %p79 = scmp.ne.s32.totalorder %s74, %s76
      %p80 = scmp.eq.s32.totalorder %s28, 0
      %p81 = por %p79, %p80
      %p82 = scmp.ne.s32.totalorder %s74, %s76
      %p83 = scmp.eq.s32.totalorder %s33, 1
      %p84 = por %p82, %p83
      %p85 = scmp.ne.s32.totalorder %s76, %s77
      %p86 = scmp.eq.s32.totalorder %s33, 0
      %p87 = por %p85, %p86
      %p88 = scmp.ne.s32.totalorder %s76, %s77
      %p89 = scmp.eq.s32.totalorder %s34, 1
      %p90 = por %p88, %p89
      %p92 = scmp.ne.s32.totalorder %s77, %s91
      %p93 = scmp.eq.s32.totalorder %s34, 0
      %p94 = por %p92, %p93
      %s96 = sadd.s32 %s95, 1
      %p99 = scmp.eq.s32.totalorder %s28, 1
      %p100 = scmp.ne.s32.totalorder %s95, %s97
      %p101 = scmp.eq.s32.totalorder %s28, 0
      %p102 = por %p100, %p101
      %p103 = scmp.ne.s32.totalorder %s95, %s97
      %p104 = scmp.eq.s32.totalorder %s33, 1
      %p105 = por %p103, %p104
      %p106 = scmp.ne.s32.totalorder %s97, %s98
      %p107 = scmp.eq.s32.totalorder %s33, 0
      %p108 = por %p106, %p107
      %p109 = scmp.ne.s32.totalorder %s97, %s98
      %p110 = scmp.eq.s32.totalorder %s34, 1
      %p111 = por %p109, %p110
      %p113 = scmp.ne.s32.totalorder %s98, %s112
      %p114 = scmp.eq.s32.totalorder %s34, 0
      %p115 = por %p113, %p114
      %s117 = sadd.s32 %s116, 1
      %p120 = scmp.eq.s32.totalorder %s28, 1
      %p121 = scmp.ne.s32.totalorder %s116, %s118
      %p122 = scmp.eq.s32.totalorder %s28, 0
      %p123 = por %p121, %p122
      %p124 = scmp.ne.s32.totalorder %s116, %s118
      %p125 = scmp.eq.s32.totalorder %s33, 1
      %p126 = por %p124, %p125
      %p127 = scmp.ne.s32.totalorder %s118, %s119
      %p128 = scmp.eq.s32.totalorder %s33, 0
      %p129 = por %p127, %p128
      %p130 = scmp.ne.s32.totalorder %s118, %s119
      %p131 = scmp.eq.s32.totalorder %s34, 1
      %p132 = por %p130, %p131
      %p134 = scmp.ne.s32.totalorder %s119, %s133
      %p135 = scmp.eq.s32.totalorder %s34, 0
      %p136 = por %p134, %p135
      %s138 = sadd.s32 %s137, 1
      %p141 = scmp.eq.s32.totalorder %s28, 1
      %p142 = scmp.ne.s32.totalorder %s137, %s139
      %p143 = scmp.eq.s32.totalorder %s28, 0
      %p144 = por %p142, %p143
      %p145 = scmp.ne.s32.totalorder %s137, %s139
      %p146 = scmp.eq.s32.totalorder %s33, 1
      %p147 = por %p145, %p146
      %p148 = scmp.ne.s32.totalorder %s139, %s140
      %p149 = scmp.eq.s32.totalorder %s33, 0
      %p150 = por %p148, %p149
      %p151 = scmp.ne.s32.totalorder %s139, %s140
      %p152 = scmp.eq.s32.totalorder %s34, 1
      %p153 = por %p151, %p152
      %p155 = scmp.ne.s32.totalorder %s140, %s154
      %p156 = scmp.eq.s32.totalorder %s34, 0
      %p157 = por %p155, %p156
      %s159 = sadd.s32 %s158, 1
      %p162 = scmp.eq.s32.totalorder %s28, 1
      %p163 = scmp.ne.s32.totalorder %s158, %s160
      %p164 = scmp.eq.s32.totalorder %s28, 0
      %p165 = por %p163, %p164
      %p166 = scmp.ne.s32.totalorder %s158, %s160
      %p167 = scmp.eq.s32.totalorder %s33, 1
      %p168 = por %p166, %p167
      %p169 = scmp.ne.s32.totalorder %s160, %s161
      %p170 = scmp.eq.s32.totalorder %s33, 0
      %p171 = por %p169, %p170
      %p172 = scmp.ne.s32.totalorder %s160, %s161
      %p173 = scmp.eq.s32.totalorder %s34, 1
      %p174 = por %p172, %p173
      %p176 = scmp.ne.s32.totalorder %s161, %s175
      %p177 = scmp.eq.s32.totalorder %s34, 0
      %p178 = por %p176, %p177
      %s180 = sadd.s32 %s179, 1
      %p183 = scmp.eq.s32.totalorder %s28, 1
      %p184 = scmp.ne.s32.totalorder %s179, %s181
      %p185 = scmp.eq.s32.totalorder %s28, 0
      %p186 = por %p184, %p185
      %p187 = scmp.ne.s32.totalorder %s179, %s181
      %p188 = scmp.eq.s32.totalorder %s33, 1
      %p189 = por %p187, %p188
      %p190 = scmp.ne.s32.totalorder %s181, %s182
      %p191 = scmp.eq.s32.totalorder %s33, 0
      %p192 = por %p190, %p191
      %p193 = scmp.ne.s32.totalorder %s181, %s182
      %p194 = scmp.eq.s32.totalorder %s34, 1
      %p195 = por %p193, %p194
      %p197 = scmp.ne.s32.totalorder %s182, %s196
      %p198 = scmp.eq.s32.totalorder %s34, 0
      %p199 = por %p197, %p198
      %s201 = sadd.s32 %s200, 1
      %p204 = scmp.eq.s32.totalorder %s28, 1
      %p205 = scmp.ne.s32.totalorder %s200, %s202
      %p206 = scmp.eq.s32.totalorder %s28, 0
      %p207 = por %p205, %p206
      %p208 = scmp.ne.s32.totalorder %s200, %s202
      %p209 = scmp.eq.s32.totalorder %s33, 1
      %p210 = por %p208, %p209
      %p211 = scmp.ne.s32.totalorder %s202, %s203
      %p212 = scmp.eq.s32.totalorder %s33, 0
      %p213 = por %p211, %p212
      %p214 = scmp.ne.s32.totalorder %s202, %s203
      %p215 = scmp.eq.s32.totalorder %s34, 1
      %p216 = por %p214, %p215
      %p218 = scmp.ne.s32.totalorder %s203, %s217
      %p219 = scmp.eq.s32.totalorder %s34, 0
      %p220 = por %p218, %p219
      %s222 = sadd.s32 %s221, 1
      %p225 = scmp.eq.s32.totalorder %s28, 1
      %p226 = scmp.ne.s32.totalorder %s221, %s223
      %p227 = scmp.eq.s32.totalorder %s28, 0
      %p228 = por %p226, %p227
      %p229 = scmp.ne.s32.totalorder %s221, %s223
      %p230 = scmp.eq.s32.totalorder %s33, 1
      %p231 = por %p229, %p230
      %p232 = scmp.ne.s32.totalorder %s223, %s224
      %p233 = scmp.eq.s32.totalorder %s33, 0
      %p234 = por %p232, %p233
      %p235 = scmp.ne.s32.totalorder %s223, %s224
      %p236 = scmp.eq.s32.totalorder %s34, 1
      %p237 = por %p235, %p236
      %p239 = scmp.ne.s32.totalorder %s224, %s238
      %p240 = scmp.eq.s32.totalorder %s34, 0
      %p241 = por %p239, %p240
      %s243 = sadd.s32 %s242, 1
      %p246 = scmp.eq.s32.totalorder %s28, 1
      %p247 = scmp.ne.s32.totalorder %s242, %s244
      %p248 = scmp.eq.s32.totalorder %s28, 0
      %p249 = por %p247, %p248
      %p250 = scmp.ne.s32.totalorder %s242, %s244
      %p251 = scmp.eq.s32.totalorder %s33, 1
      %p252 = por %p250, %p251
      %p253 = scmp.ne.s32.totalorder %s244, %s245
      %p254 = scmp.eq.s32.totalorder %s33, 0
      %p255 = por %p253, %p254
      %p256 = scmp.ne.s32.totalorder %s244, %s245
      %p257 = scmp.eq.s32.totalorder %s34, 1
      %p258 = por %p256, %p257
      %p260 = scmp.ne.s32.totalorder %s245, %s259
      %p261 = scmp.eq.s32.totalorder %s34, 0
      %p262 = por %p260, %p261
      %s264 = sadd.s32 %s263, 1
      %p267 = scmp.eq.s32.totalorder %s28, 1
      %p268 = scmp.ne.s32.totalorder %s263, %s265
      %p269 = scmp.eq.s32.totalorder %s28, 0
      %p270 = por %p268, %p269
      %p271 = scmp.ne.s32.totalorder %s263, %s265
      %p272 = scmp.eq.s32.totalorder %s33, 1
      %p273 = por %p271, %p272
      %p274 = scmp.ne.s32.totalorder %s265, %s266
      %p275 = scmp.eq.s32.totalorder %s33, 0
      %p276 = por %p274, %p275
      %p277 = scmp.ne.s32.totalorder %s265, %s266
      %p278 = scmp.eq.s32.totalorder %s34, 1
      %p279 = por %p277, %p278
      %p281 = scmp.ne.s32.totalorder %s266, %s280
      %p282 = scmp.eq.s32.totalorder %s34, 0
      %p283 = por %p281, %p282
      %s285 = sadd.s32 %s284, 1
      %p288 = scmp.eq.s32.totalorder %s28, 1
      %p289 = scmp.ne.s32.totalorder %s284, %s286
      %p290 = scmp.eq.s32.totalorder %s28, 0
      %p291 = por %p289, %p290
      %p292 = scmp.ne.s32.totalorder %s284, %s286
      %p293 = scmp.eq.s32.totalorder %s33, 1
      %p294 = por %p292, %p293
      %p295 = scmp.ne.s32.totalorder %s286, %s287
      %p296 = scmp.eq.s32.totalorder %s33, 0
      %p297 = por %p295, %p296
      %p298 = scmp.ne.s32.totalorder %s286, %s287
      %p299 = scmp.eq.s32.totalorder %s34, 1
      %p300 = por %p298, %p299
      %p302 = scmp.ne.s32.totalorder %s287, %s301
      %p303 = scmp.eq.s32.totalorder %s34, 0
      %p304 = por %p302, %p303
      %s306 = sadd.s32 %s305, 1
      %p309 = scmp.eq.s32.totalorder %s28, 1
      %p310 = scmp.ne.s32.totalorder %s305, %s307
      %p311 = scmp.eq.s32.totalorder %s28, 0
      %p312 = por %p310, %p311
      %p313 = scmp.ne.s32.totalorder %s305, %s307
      %p314 = scmp.eq.s32.totalorder %s33, 1
      %p315 = por %p313, %p314
      %p316 = scmp.ne.s32.totalorder %s307, %s308
      %p317 = scmp.eq.s32.totalorder %s33, 0
      %p318 = por %p316, %p317
      %p319 = scmp.ne.s32.totalorder %s307, %s308
      %p320 = scmp.eq.s32.totalorder %s34, 1
      %p321 = por %p319, %p320
      %p323 = scmp.ne.s32.totalorder %s308, %s322
      %p324 = scmp.eq.s32.totalorder %s34, 0
      %p325 = por %p323, %p324
      %s327 = sadd.s32 %s326, 1
      %p330 = scmp.eq.s32.totalorder %s28, 1
      %p331 = scmp.ne.s32.totalorder %s326, %s328
      %p332 = scmp.eq.s32.totalorder %s28, 0
      %p333 = por %p331, %p332
      %p334 = scmp.ne.s32.totalorder %s326, %s328
      %p335 = scmp.eq.s32.totalorder %s33, 1
      %p336 = por %p334, %p335
      %p337 = scmp.ne.s32.totalorder %s328, %s329
      %p338 = scmp.eq.s32.totalorder %s33, 0
      %p339 = por %p337, %p338
      %p340 = scmp.ne.s32.totalorder %s328, %s329
      %p341 = scmp.eq.s32.totalorder %s34, 1
      %p342 = por %p340, %p341
      %p344 = scmp.ne.s32.totalorder %s329, %s343
      %p345 = scmp.eq.s32.totalorder %s34, 0
      %p346 = por %p344, %p345
      %s348 = sadd.s32 %s347, 1
      %p351 = scmp.eq.s32.totalorder %s28, 1
      %p352 = scmp.ne.s32.totalorder %s347, %s349
      %p353 = scmp.eq.s32.totalorder %s28, 0
      %p354 = por %p352, %p353
      %p355 = scmp.ne.s32.totalorder %s347, %s349
      %p356 = scmp.eq.s32.totalorder %s33, 1
      %p357 = por %p355, %p356
      %p358 = scmp.ne.s32.totalorder %s349, %s350
      %p359 = scmp.eq.s32.totalorder %s33, 0
      %p360 = por %p358, %p359
      %p361 = scmp.ne.s32.totalorder %s349, %s350
      %p362 = scmp.eq.s32.totalorder %s34, 1
      %p363 = por %p361, %p362
      %p365 = scmp.ne.s32.totalorder %s350, %s364
      %p366 = scmp.eq.s32.totalorder %s34, 0
      %p367 = por %p365, %p366
      %s368 = ssub.s32 %s35, %s47
      %s369 = ssub.s32 %s36, %s43
      %s370 = sor.u32 %s368, %s369
      %p371 = scmp.eq.s32.totalorder %s370, 0
      %s373 = sadd.s32 %s372, 1
      %s374 = scalar_select %p371, %s372, %s373
      %p377 = pneg %p371
      %p378 = scmp.eq.s32.totalorder %s28, 1
      %p379 = por %p377, %p378
      %p380 = scmp.ne.s32.totalorder %s372, %s375
      %p381 = scmp.eq.s32.totalorder %s28, 0
      %p382 = por %p380, %p381
      %p383 = scmp.ne.s32.totalorder %s372, %s375
      %p384 = scmp.eq.s32.totalorder %s33, 1
      %p385 = por %p383, %p384
      %p386 = scmp.ne.s32.totalorder %s375, %s376
      %p387 = scmp.eq.s32.totalorder %s33, 0
      %p388 = por %p386, %p387
      %p389 = scmp.ne.s32.totalorder %s375, %s376
      %p390 = scmp.eq.s32.totalorder %s34, 1
      %p391 = por %p389, %p390
      %p393 = scmp.ne.s32.totalorder %s376, %s392
      %p394 = scmp.eq.s32.totalorder %s34, 0
      %p395 = por %p393, %p394
      %p396 = scmp.le.s32.totalorder 1, %s28
      %p397 = scmp.lt.s32.totalorder %s28, 3
      %p398 = pnand %p396, %p397
      %p399 = pneg %p398
      // Predicated region
      $region9: #{tpu_custom_call.1} parent=5 // pred_check
        _
      $region10: #{tpu_custom_call.1} parent=5 // pred_check_branch
        %401 = sbr.rel (%p398) target = $region12
      $region11: #{tpu_custom_call.1} parent=5 // pred_region
        %s402 = ssub.s32 %s28, 1
        // Predicated region
        $region13: #{tpu_custom_call.1} parent=11 // pred_check
          %p403 = pneg %p87
        $region14: #{tpu_custom_call.1} parent=11 // pred_check_branch
          %405 = sbr.rel (%p403) target = $region16
        $region15: #{tpu_custom_call.1} parent=11 // pred_region
          _
        $region16: #{tpu_custom_call.1} parent=11 // pred_fallthru
          _
        // Predicated region
        $region17: #{tpu_custom_call.1} parent=11 // pred_check
          %p406 = pneg %p108
        $region18: #{tpu_custom_call.1} parent=11 // pred_check_branch
          %408 = sbr.rel (%p406) target = $region20
        $region19: #{tpu_custom_call.1} parent=11 // pred_region
          _
        $region20: #{tpu_custom_call.1} parent=11 // pred_fallthru
          _
        // Predicated region
        $region21: #{tpu_custom_call.1} parent=11 // pred_check
          %p409 = pneg %p129
        $region22: #{tpu_custom_call.1} parent=11 // pred_check_branch
          %411 = sbr.rel (%p409) target = $region24
        $region23: #{tpu_custom_call.1} parent=11 // pred_region
          _
        $region24: #{tpu_custom_call.1} parent=11 // pred_fallthru
          _
        // Predicated region
        $region25: #{tpu_custom_call.1} parent=11 // pred_check
          %p412 = pneg %p150
        $region26: #{tpu_custom_call.1} parent=11 // pred_check_branch
          %414 = sbr.rel (%p412) target = $region28
        $region27: #{tpu_custom_call.1} parent=11 // pred_region
          _
        $region28: #{tpu_custom_call.1} parent=11 // pred_fallthru
          _
        // Predicated region
        $region29: #{tpu_custom_call.1} parent=11 // pred_check
          %p415 = pneg %p171
        $region30: #{tpu_custom_call.1} parent=11 // pred_check_branch
          %417 = sbr.rel (%p415) target = $region32
        $region31: #{tpu_custom_call.1} parent=11 // pred_region
          _
        $region32: #{tpu_custom_call.1} parent=11 // pred_fallthru
          _
        // Predicated region
        $region33: #{tpu_custom_call.1} parent=11 // pred_check
          %p418 = pneg %p192
        $region34: #{tpu_custom_call.1} parent=11 // pred_check_branch
          %420 = sbr.rel (%p418) target = $region36
        $region35: #{tpu_custom_call.1} parent=11 // pred_region
          _
        $region36: #{tpu_custom_call.1} parent=11 // pred_fallthru
          _
        // Predicated region
        $region37: #{tpu_custom_call.1} parent=11 // pred_check
          %p421 = pneg %p213
        $region38: #{tpu_custom_call.1} parent=11 // pred_check_branch
          %423 = sbr.rel (%p421) target = $region40
        $region39: #{tpu_custom_call.1} parent=11 // pred_region
          _
        $region40: #{tpu_custom_call.1} parent=11 // pred_fallthru
          _
        // Predicated region
        $region41: #{tpu_custom_call.1} parent=11 // pred_check
          %p424 = pneg %p234
        $region42: #{tpu_custom_call.1} parent=11 // pred_check_branch
          %426 = sbr.rel (%p424) target = $region44
        $region43: #{tpu_custom_call.1} parent=11 // pred_region
          _
        $region44: #{tpu_custom_call.1} parent=11 // pred_fallthru
          _
        // Predicated region
        $region45: #{tpu_custom_call.1} parent=11 // pred_check
          %p427 = pneg %p255
        $region46: #{tpu_custom_call.1} parent=11 // pred_check_branch
          %429 = sbr.rel (%p427) target = $region48
        $region47: #{tpu_custom_call.1} parent=11 // pred_region
          _
        $region48: #{tpu_custom_call.1} parent=11 // pred_fallthru
          _
        // Predicated region
        $region49: #{tpu_custom_call.1} parent=11 // pred_check
          %p430 = pneg %p276
        $region50: #{tpu_custom_call.1} parent=11 // pred_check_branch
          %432 = sbr.rel (%p430) target = $region52
        $region51: #{tpu_custom_call.1} parent=11 // pred_region
          _
        $region52: #{tpu_custom_call.1} parent=11 // pred_fallthru
          _
        // Predicated region
        $region53: #{tpu_custom_call.1} parent=11 // pred_check
          %p433 = pneg %p297
        $region54: #{tpu_custom_call.1} parent=11 // pred_check_branch
          %435 = sbr.rel (%p433) target = $region56
        $region55: #{tpu_custom_call.1} parent=11 // pred_region
          %s437 = ssub.s32 512, 512
          %438 = vsyncadd [#allocation9], %s437
          %s439 = sshll.u32 [#allocation8], 4
          %s440 = int_to_ptr.vmem [resolvable:$true] %s439
          %445 = dma.hbm_to_vmem [thread:$0]  %s11, 512, %s440, [#allocation9], 128, 128, 8
        $region56: #{tpu_custom_call.1} parent=11 // pred_fallthru
          _
        // Predicated region
        $region57: #{tpu_custom_call.1} parent=11 // pred_check
          %p446 = pneg %p318
        $region58: #{tpu_custom_call.1} parent=11 // pred_check_branch
          %448 = sbr.rel (%p446) target = $region60
        $region59: #{tpu_custom_call.1} parent=11 // pred_region
          _
        $region60: #{tpu_custom_call.1} parent=11 // pred_fallthru
          _
        // Predicated region
        $region61: #{tpu_custom_call.1} parent=11 // pred_check
          %p449 = pneg %p339
        $region62: #{tpu_custom_call.1} parent=11 // pred_check_branch
          %451 = sbr.rel (%p449) target = $region64
        $region63: #{tpu_custom_call.1} parent=11 // pred_region
          _
        $region64: #{tpu_custom_call.1} parent=11 // pred_fallthru
          _
        // Predicated region
        $region65: #{tpu_custom_call.1} parent=11 // pred_check
          %p452 = pneg %p360
        $region66: #{tpu_custom_call.1} parent=11 // pred_check_branch
          %454 = sbr.rel (%p452) target = $region68
        $region67: #{tpu_custom_call.1} parent=11 // pred_region
          _
        $region68: #{tpu_custom_call.1} parent=11 // pred_fallthru
          _
      $region12: #{tpu_custom_call.1} parent=5 // pred_fallthru
        _
      %p455 = scmp.lt.s32.totalorder %s28, 2
      // Predicated region
      $region69: #{tpu_custom_call.1} parent=5 // pred_check
        %p456 = pneg %p455
      $region70: #{tpu_custom_call.1} parent=5 // pred_check_branch
        %458 = sbr.rel (%p456) target = $region72
      $region71: #{tpu_custom_call.1} parent=5 // pred_region
        // Predicated region
        $region73: #{tpu_custom_call.1} parent=71 // pred_check
          %p459 = pneg %p60
        $region74: #{tpu_custom_call.1} parent=71 // pred_check_branch
          %461 = sbr.rel (%p459) target = $region76
        $region75: #{tpu_custom_call.1} parent=71 // pred_region
          %s462 = sand.u32 %s50, 1
          %s463 = scalar_lea.sflag [#allocation6], %s462
          %s464 = sand.u32 %s50, 1
          %s465 = smul.addr %s464, 8
          %s466 = scalar_lea.vmem [#allocation5], %s465
          %s468 = ssub.s32 128, 128
          %469 = vsyncadd %s463, %s468
          %s470 = smul.addr %s35, 128
          %s471 = scalar_lea.hbm %s0, %s470
          %s473 = sshll.u32 %s466, 4
          %s474 = int_to_ptr.vmem [resolvable:$true] %s473
          %476 = dma.hbm_to_vmem [thread:$0]  %s471, 128, %s474, %s463
        $region76: #{tpu_custom_call.1} parent=71 // pred_fallthru
          _
      $region72: #{tpu_custom_call.1} parent=5 // pred_fallthru
        _
      %p477 = scmp.le.s32.totalorder 1, %s28
      %p478 = scmp.lt.s32.totalorder %s28, 3
      %p479 = pnand %p477, %p478
      %p480 = pneg %p479
      // Predicated region
      $region77: #{tpu_custom_call.1} parent=5 // pred_check
        _
      $region78: #{tpu_custom_call.1} parent=5 // pred_check_branch
        %482 = sbr.rel (%p479) target = $region80
      $region79: #{tpu_custom_call.1} parent=5 // pred_region
        %s483 = ssub.s32 %s28, 1
        %s484 = sand.u32 %s53, 1
        %s485 = scalar_lea.sflag [#allocation6], %s484
        %s486 = sand.u32 %s53, 1
        %s487 = smul.addr %s486, 8
        %s488 = scalar_lea.vmem [#allocation5], %s487
        // Predicated region
        $region81: #{tpu_custom_call.1} parent=79 // pred_check
          %p489 = pneg %p66
        $region82: #{tpu_custom_call.1} parent=79 // pred_check_branch
          %491 = sbr.rel (%p489) target = $region84
        $region83: #{tpu_custom_call.1} parent=79 // pred_region
          %492 = dma.done %s485, 128
        $region84: #{tpu_custom_call.1} parent=79 // pred_fallthru
          _
        // Predicated region
        $region85: #{tpu_custom_call.1} parent=79 // pred_check
          %p493 = pneg %p297
        $region86: #{tpu_custom_call.1} parent=79 // pred_check_branch
          %495 = sbr.rel (%p493) target = $region88
        $region87: #{tpu_custom_call.1} parent=79 // pred_region
          %496 = dma.done [#allocation9], 512
        $region88: #{tpu_custom_call.1} parent=79 // pred_fallthru
          _
        %s497 = sand.u32 %s53, 1
        %s498 = scalar_lea.sflag [#allocation6], %s497
        %s499 = sand.u32 %s53, 1
        %s500 = smul.addr %s499, 8
        %s501 = scalar_lea.vmem [#allocation5], %s500
        %p502 = pneg %p66
        %p503 = pneg %p63
        %p504 = pneg %p87
        %p505 = pneg %p84
        %p506 = pneg %p108
        %p507 = pneg %p105
        %p508 = pneg %p129
        %p509 = pneg %p126
        %p510 = pneg %p150
        %p511 = pneg %p147
        %p512 = pneg %p171
        %p513 = pneg %p168
        %p514 = pneg %p192
        %p515 = pneg %p189
        %p516 = pneg %p213
        %p517 = pneg %p210
        %p518 = pneg %p234
        %p519 = pneg %p231
        %p520 = pneg %p255
        %p521 = pneg %p252
        %p522 = pneg %p276
        %p523 = pneg %p273
        %p524 = pneg %p297
        %p525 = pneg %p294
        %p526 = pneg %p318
        %p527 = pneg %p315
        %p528 = pneg %p339
        %p529 = pneg %p336
        %p530 = pneg %p360
        %p531 = pneg %p357
        %p532 = pneg %p388
        %p533 = pneg %p385
        %s534 = sand.u32 %s375, 1
        %s535 = scalar_lea.sflag [#allocation7], %s534
        %s536 = sand.u32 %s375, 1
        %s537 = smul.addr %s536, 8
        %s538 = scalar_lea.vmem [#allocation10], %s537
        %p539 = scmp.eq.s32.totalorder %s38, 0
        // Predicated region
        $region89: #{tpu_custom_call.1} parent=79 // pred_check
          %p540 = pneg %p539
        $region90: #{tpu_custom_call.1} parent=79 // pred_check_branch
          %542 = sbr.rel (%p540) target = $region92
        $region91: #{tpu_custom_call.1} parent=79 // pred_region
          %v543 = vld [vmem:[%s488] sm:$0xff]
          %v544 = vld [vmem:[%s1] sm:$0x1]
          %v545 = vld [vmem:[%s2] sm:$0x1]
          %vm546 = vcmask 261120
          %v547 = vsel %vm546, %v543, 0.0
          %548 = vadd.xlane.f32.xlu0 %v547
          %v549 = vpop.xlane.xlu0 %548
          %v550 = vrcp.pop 32.0
          %v551 = vmul.f32 %v549, %v550
          %v552 = vsub.f32 %v543, %v551
          %v553 = vmul.f32 %v552, %v552
          %v554 = vsel %vm546, %v553, 0.0
          %555 = vadd.xlane.f32.xlu0 %v554
          %v556 = vpop.xlane.xlu0 %555
          %v557 = vmul.f32 %v556, %v550
          %v558 = vadd.f32 %v557, 1e-06
          %v559 = vrsqrt.pop %v558
          %v560 = vmul.f32 %v552, %v559
          %v562 = vlaneseq
          %v563 = vshrl.u32 %v562, 7
          %v564 = vsub.s32 0, %v563
          %v565 = vrot.slane %v544, %v564
          %v567 = vmul.f32 %v560, %v565
          %v569 = vlaneseq
          %v570 = vshrl.u32 %v569, 7
          %v571 = vsub.s32 0, %v570
          %v572 = vrot.slane %v545, %v571
          %v574 = vadd.f32 %v567, %v572
          %575 = vst.msk [vmem:[#allocation4] sm:$0xff] %vm546, %v574
          %v576 = vld [vmem:[%s5] sm:$0xff]
          %v577 = vld [vmem:[%s5 + $0x8] sm:$0xff]
          %v578 = vld [vmem:[%s5 + $0x10] sm:$0xff]
          %v579 = vld [vmem:[%s5 + $0x18] sm:$0xff]
          %v580 = vld [vmem:[%s6] sm:$0x1]
          %v582 = vlaneseq
          %v583 = vshrl.u32 %v582, 7
          %v584 = vsub.s32 0, %v583
          %v585 = vrot.slane %v580, %v584
          %v588 = vsel %vm546, %v574, 0
          %590 = vmatprep.subr.mxu0 0.0
          %591 = vmatpush1.msra.mxu0 %v576
          %592 = vmatprep.subr.mxu0 0.0
          %593 = vmatpush1.msra.mxu0 %v577
          %594 = vmatprep.subr.mxu0 0.0
          %595 = vmatpush1.msra.mxu0 %v578
          %596 = vmatprep.subr.mxu0 0.0
          %597 = vmatpush1.msra.mxu0 %v579
          %598 = vmatprep.subr.mxu0 0.0
          %599 = vmatpush1.msra.mxu0 0.0
          %600 = vmatprep.subr.mxu0 0.0
          %601 = vmatpush1.msra.mxu0 0.0
          %602 = vmatprep.subr.mxu0 0.0
          %603 = vmatpush1.msra.mxu0 0.0
          %604 = vmatprep.subr.mxu0 0.0
          %605 = vmatpush1.msra.mxu0 0.0
          %606 = vmatprep.subr.mxu0 0.0
          %607 = vmatpush1.msra.mxu0 0.0
          %608 = vmatprep.subr.mxu0 0.0
          %609 = vmatpush1.msra.mxu0 0.0
          %610 = vmatprep.subr.mxu0 0.0
          %611 = vmatpush1.msra.mxu0 0.0
          %612 = vmatprep.subr.mxu0 0.0
          %613 = vmatpush1.msra.mxu0 0.0
          %614 = vmatprep.subr.mxu0 0.0
          %615 = vmatpush1.msra.mxu0 0.0
          %616 = vmatprep.subr.mxu0 0.0
          %617 = vmatpush1.msra.mxu0 0.0
          %618 = vmatprep.subr.mxu0 0.0
          %619 = vmatpush1.msra.mxu0 0.0
          %620 = vmatprep.subr.mxu0 0.0
          %621 = vmatpush1.msra.mxu0 0.0
          %622 = vmatprep.subr.mxu0 0.0
          %623 = vmatpush1.msra.mxu0 0.0
          %624 = vmatprep.subr.mxu0 0.0
          %625 = vmatpush1.msra.mxu0 0.0
          %626 = vmatprep.subr.mxu0 0.0
          %627 = vmatpush1.msra.mxu0 0.0
          %628 = vmatprep.subr.mxu0 0.0
          %629 = vmatpush1.msra.mxu0 0.0
          %630 = vmatprep.subr.mxu0 0.0
          %631 = vmatpush1.msra.mxu0 0.0
          %632 = vmatprep.subr.mxu0 0.0
          %633 = vmatpush1.msra.mxu0 0.0
          %634 = vmatprep.subr.mxu0 0.0
          %635 = vmatpush1.msra.mxu0 0.0
          %636 = vmatprep.subr.mxu0 0.0
          %637 = vmatpush1.msra.mxu0 0.0
          %638 = vmatprep.subr.mxu0 0.0
          %639 = vmatpush1.msra.mxu0 0.0
          %640 = vmatprep.subr.mxu0 0.0
          %641 = vmatpush1.msra.mxu0 0.0
          %642 = vmatprep.subr.mxu0 0.0
          %643 = vmatpush1.msra.mxu0 0.0
          %644 = vmatprep.subr.mxu0 0.0
          %645 = vmatpush1.msra.mxu0 0.0
          %646 = vmatprep.subr.mxu0 0.0
          %647 = vmatpush1.msra.mxu0 0.0
          %648 = vmatprep.subr.mxu0 0.0
          %649 = vmatpush1.msra.mxu0 0.0
          %650 = vmatprep.subr.mxu0 0.0
          %651 = vmatpush1.msra.mxu0 0.0
          %652 = vmatprep.subr.mxu0 0.0
          %653 = vmatpush1.msra.mxu0 0.0
          %654 = vmatprep.mubr.f32.mxu0 0.0
          %655 = vmatmul.mubr.f32.gmra.mrb[0].mxu0 %v588
          %v656 = vpop.f32.mrb[0].mxu0
          %v657 = vadd.f32 %v585, %v656
          %v658 = vpop.f32.mrb[0].mxu0
          %659 = vdwg.mxu0
          %vm660 = vcmask 64512
          %661 = vst.msk [vmem:[#allocation2] sm:$0xff] %vm660, %v657
          %663 = vrot.lane.b32.xlu0 %v657, 96
          %v664 = vpop.permute.xlu0 %663
          %666 = vst.msk [vmem:[#allocation3] sm:$0xff] %vm660, %v664
          %667 = vrot.lane.b32.xlu0 %v657, 120
          %v668 = vpop.permute.xlu0 %667
          %s670 = scalar_lea.vmem [#allocation2], 8
          %671 = vst.msk [vmem:[%s670] sm:$0xff] %vm660, %v668
          %672 = vrot.lane.b32.xlu0 %v657, 88
          %v673 = vpop.permute.xlu0 %672
          %s675 = scalar_lea.vmem [#allocation3], 8
          %676 = vst.msk [vmem:[%s675] sm:$0xff] %vm660, %v673
          %677 = vrot.lane.b32.xlu0 %v657, 112
          %v678 = vpop.permute.xlu0 %677
          %s680 = scalar_lea.vmem [#allocation2], 16
          %681 = vst.msk [vmem:[%s680] sm:$0xff] %vm660, %v678
          %682 = vrot.lane.b32.xlu0 %v657, 80
          %v683 = vpop.permute.xlu0 %682
          %s685 = scalar_lea.vmem [#allocation3], 16
          %686 = vst.msk [vmem:[%s685] sm:$0xff] %vm660, %v683
          %687 = vrot.lane.b32.xlu0 %v657, 104
          %v688 = vpop.permute.xlu0 %687
          %s690 = scalar_lea.vmem [#allocation2], 24
          %691 = vst.msk [vmem:[%s690] sm:$0xff] %vm660, %v688
          %692 = vrot.lane.b32.xlu0 %v657, 72
          %v693 = vpop.permute.xlu0 %692
          %s695 = scalar_lea.vmem [#allocation3], 24
          %696 = vst.msk [vmem:[%s695] sm:$0xff] %vm660, %v693
        $region92: #{tpu_custom_call.1} parent=79 // pred_fallthru
          _
        %v697 = vld [vmem:[%s488] sm:$0xff]
        %v698 = vld [vmem:[#allocation4] sm:$0xff]
        %v699 = vld [vmem:[%s3] sm:$0xff]
        %v700 = vld [vmem:[%s3 + $0x8] sm:$0xff]
        %v701 = vld [vmem:[%s3 + $0x10] sm:$0xff]
        %v702 = vld [vmem:[%s3 + $0x18] sm:$0xff]
        %v703 = vld [vmem:[%s4] sm:$0x1]
        %v705 = vlaneseq
        %v706 = vshrl.u32 %v705, 7
        %v707 = vsub.s32 0, %v706
        %v708 = vrot.slane %v703, %v707
        %vm710 = vcmask 261120
        %v712 = vsel %vm710, %v698, 0
        %714 = vmatprep.subr.mxu0 0.0
        %715 = vmatpush1.msra.mxu0 %v699
        %716 = vmatprep.subr.mxu0 0.0
        %717 = vmatpush1.msra.mxu0 %v700
        %718 = vmatprep.subr.mxu0 0.0
        %719 = vmatpush1.msra.mxu0 %v701
        %720 = vmatprep.subr.mxu0 0.0
        %721 = vmatpush1.msra.mxu0 %v702
        %722 = vmatprep.subr.mxu0 0.0
        %723 = vmatpush1.msra.mxu0 0.0
        %724 = vmatprep.subr.mxu0 0.0
        %725 = vmatpush1.msra.mxu0 0.0
        %726 = vmatprep.subr.mxu0 0.0
        %727 = vmatpush1.msra.mxu0 0.0
        %728 = vmatprep.subr.mxu0 0.0
        %729 = vmatpush1.msra.mxu0 0.0
        %730 = vmatprep.subr.mxu0 0.0
        %731 = vmatpush1.msra.mxu0 0.0
        %732 = vmatprep.subr.mxu0 0.0
        %733 = vmatpush1.msra.mxu0 0.0
        %734 = vmatprep.subr.mxu0 0.0
        %735 = vmatpush1.msra.mxu0 0.0
        %736 = vmatprep.subr.mxu0 0.0
        %737 = vmatpush1.msra.mxu0 0.0
        %738 = vmatprep.subr.mxu0 0.0
        %739 = vmatpush1.msra.mxu0 0.0
        %740 = vmatprep.subr.mxu0 0.0
        %741 = vmatpush1.msra.mxu0 0.0
        %742 = vmatprep.subr.mxu0 0.0
        %743 = vmatpush1.msra.mxu0 0.0
        %744 = vmatprep.subr.mxu0 0.0
        %745 = vmatpush1.msra.mxu0 0.0
        %746 = vmatprep.subr.mxu0 0.0
        %747 = vmatpush1.msra.mxu0 0.0
        %748 = vmatprep.subr.mxu0 0.0
        %749 = vmatpush1.msra.mxu0 0.0
        %750 = vmatprep.subr.mxu0 0.0
        %751 = vmatpush1.msra.mxu0 0.0
        %752 = vmatprep.subr.mxu0 0.0
        %753 = vmatpush1.msra.mxu0 0.0
        %754 = vmatprep.subr.mxu0 0.0
        %755 = vmatpush1.msra.mxu0 0.0
        %756 = vmatprep.subr.mxu0 0.0
        %757 = vmatpush1.msra.mxu0 0.0
        %758 = vmatprep.subr.mxu0 0.0
        %759 = vmatpush1.msra.mxu0 0.0
        %760 = vmatprep.subr.mxu0 0.0
        %761 = vmatpush1.msra.mxu0 0.0
        %762 = vmatprep.subr.mxu0 0.0
        %763 = vmatpush1.msra.mxu0 0.0
        %764 = vmatprep.subr.mxu0 0.0
        %765 = vmatpush1.msra.mxu0 0.0
        %766 = vmatprep.subr.mxu0 0.0
        %767 = vmatpush1.msra.mxu0 0.0
        %768 = vmatprep.subr.mxu0 0.0
        %769 = vmatpush1.msra.mxu0 0.0
        %770 = vmatprep.subr.mxu0 0.0
        %771 = vmatpush1.msra.mxu0 0.0
        %772 = vmatprep.subr.mxu0 0.0
        %773 = vmatpush1.msra.mxu0 0.0
        %774 = vmatprep.subr.mxu0 0.0
        %775 = vmatpush1.msra.mxu0 0.0
        %776 = vmatprep.subr.mxu0 0.0
        %777 = vmatpush1.msra.mxu0 0.0
        %778 = vmatprep.mubr.f32.mxu0 0.0
        %779 = vmatmul.mubr.f32.gmra.mrb[0].mxu0 %v712
        %v780 = vpop.f32.mrb[0].mxu0
        %v781 = vadd.f32 %v708, %v780
        %v782 = vpop.f32.mrb[0].mxu0
        %783 = vdwg.mxu0
        %785 = vrot.lane.b32.xlu0 %v781, 120
        %v786 = vpop.permute.xlu0 %785
        %787 = vrot.lane.b32.xlu0 %v781, 112
        %v788 = vpop.permute.xlu0 %787
        %789 = vrot.lane.b32.xlu0 %v781, 104
        %v790 = vpop.permute.xlu0 %789
        %v791 = vld [vmem:[#allocation2] sm:$0xff]
        %v792 = vld [vmem:[#allocation2 + $0x8] sm:$0xff]
        %v793 = vld [vmem:[#allocation2 + $0x10] sm:$0xff]
        %v794 = vld [vmem:[#allocation2 + $0x18] sm:$0xff]
        %vm795 = vcmask 64512
        %v796 = vsel %vm795, %v781, 0
        %v799 = vsel %vm795, %v791, 0
        %801 = vmatprep.subr.mxu0 0.0
        %802 = vmatpush1.xpose.msra.mxu0 %v799
        %803 = vmatprep.subr.mxu0 0.0
        %804 = vmatpush1.xpose.msra.mxu0 0.0
        %805 = vmatprep.subr.mxu0 0.0
        %806 = vmatpush1.xpose.msra.mxu0 0.0
        %807 = vmatprep.subr.mxu0 0.0
        %808 = vmatpush1.xpose.msra.mxu0 0.0
        %809 = vmatprep.subr.mxu0 0.0
        %810 = vmatpush1.xpose.msra.mxu0 0.0
        %811 = vmatprep.subr.mxu0 0.0
        %812 = vmatpush1.xpose.msra.mxu0 0.0
        %813 = vmatprep.subr.mxu0 0.0
        %814 = vmatpush1.xpose.msra.mxu0 0.0
        %815 = vmatprep.subr.mxu0 0.0
        %816 = vmatpush1.xpose.msra.mxu0 0.0
        %817 = vmatprep.subr.mxu0 0.0
        %818 = vmatpush1.xpose.msra.mxu0 0.0
        %819 = vmatprep.subr.mxu0 0.0
        %820 = vmatpush1.xpose.msra.mxu0 0.0
        %821 = vmatprep.subr.mxu0 0.0
        %822 = vmatpush1.xpose.msra.mxu0 0.0
        %823 = vmatprep.subr.mxu0 0.0
        %824 = vmatpush1.xpose.msra.mxu0 0.0
        %825 = vmatprep.subr.mxu0 0.0
        %826 = vmatpush1.xpose.msra.mxu0 0.0
        %827 = vmatprep.subr.mxu0 0.0
        %828 = vmatpush1.xpose.msra.mxu0 0.0
        %829 = vmatprep.subr.mxu0 0.0
        %830 = vmatpush1.xpose.msra.mxu0 0.0
        %831 = vmatprep.subr.mxu0 0.0
        %832 = vmatpush1.xpose.msra.mxu0 0.0
        %833 = vmatprep.subr.mxu0 0.0
        %834 = vmatpush1.xpose.msra.mxu0 0.0
        %835 = vmatprep.subr.mxu0 0.0
        %836 = vmatpush1.xpose.msra.mxu0 0.0
        %837 = vmatprep.subr.mxu0 0.0
        %838 = vmatpush1.xpose.msra.mxu0 0.0
        %839 = vmatprep.subr.mxu0 0.0
        %840 = vmatpush1.xpose.msra.mxu0 0.0
        %841 = vmatprep.subr.mxu0 0.0
        %842 = vmatpush1.xpose.msra.mxu0 0.0
        %843 = vmatprep.subr.mxu0 0.0
        %844 = vmatpush1.xpose.msra.mxu0 0.0
        %845 = vmatprep.subr.mxu0 0.0
        %846 = vmatpush1.xpose.msra.mxu0 0.0
        %847 = vmatprep.subr.mxu0 0.0
        %848 = vmatpush1.xpose.msra.mxu0 0.0
        %849 = vmatprep.subr.mxu0 0.0
        %850 = vmatpush1.xpose.msra.mxu0 0.0
        %851 = vmatprep.subr.mxu0 0.0
        %852 = vmatpush1.xpose.msra.mxu0 0.0
        %853 = vmatprep.subr.mxu0 0.0
        %854 = vmatpush1.xpose.msra.mxu0 0.0
        %855 = vmatprep.subr.mxu0 0.0
        %856 = vmatpush1.xpose.msra.mxu0 0.0
        %857 = vmatprep.subr.mxu0 0.0
        %858 = vmatpush1.xpose.msra.mxu0 0.0
        %859 = vmatprep.subr.mxu0 0.0
        %860 = vmatpush1.xpose.msra.mxu0 0.0
        %861 = vmatprep.subr.mxu0 0.0
        %862 = vmatpush1.xpose.msra.mxu0 0.0
        %863 = vmatprep.subr.mxu0 0.0
        %864 = vmatpush1.xpose.msra.mxu0 0.0
        %865 = vmatprep.mubr.f32.mxu0 0.0
        %866 = vmatmul.mubr.f32.gmra.mrb[0].mxu0 %v796
        %v867 = vpop.f32.mrb[0].mxu0
        %v868 = vadd.f32 0.0, %v867
        %v869 = vpop.f32.mrb[0].mxu0
        %870 = vdwg.mxu0
        %v871 = vsel %vm795, %v786, 0
        %v874 = vsel %vm795, %v792, 0
        %876 = vmatprep.subr.mxu0 0.0
        %877 = vmatpush1.xpose.msra.mxu0 %v874
        %878 = vmatprep.subr.mxu0 0.0
        %879 = vmatpush1.xpose.msra.mxu0 0.0
        %880 = vmatprep.subr.mxu0 0.0
        %881 = vmatpush1.xpose.msra.mxu0 0.0
        %882 = vmatprep.subr.mxu0 0.0
        %883 = vmatpush1.xpose.msra.mxu0 0.0
        %884 = vmatprep.subr.mxu0 0.0
        %885 = vmatpush1.xpose.msra.mxu0 0.0
        %886 = vmatprep.subr.mxu0 0.0
        %887 = vmatpush1.xpose.msra.mxu0 0.0
        %888 = vmatprep.subr.mxu0 0.0
        %889 = vmatpush1.xpose.msra.mxu0 0.0
        %890 = vmatprep.subr.mxu0 0.0
        %891 = vmatpush1.xpose.msra.mxu0 0.0
        %892 = vmatprep.subr.mxu0 0.0
        %893 = vmatpush1.xpose.msra.mxu0 0.0
        %894 = vmatprep.subr.mxu0 0.0
        %895 = vmatpush1.xpose.msra.mxu0 0.0
        %896 = vmatprep.subr.mxu0 0.0
        %897 = vmatpush1.xpose.msra.mxu0 0.0
        %898 = vmatprep.subr.mxu0 0.0
        %899 = vmatpush1.xpose.msra.mxu0 0.0
        %900 = vmatprep.subr.mxu0 0.0
        %901 = vmatpush1.xpose.msra.mxu0 0.0
        %902 = vmatprep.subr.mxu0 0.0
        %903 = vmatpush1.xpose.msra.mxu0 0.0
        %904 = vmatprep.subr.mxu0 0.0
        %905 = vmatpush1.xpose.msra.mxu0 0.0
        %906 = vmatprep.subr.mxu0 0.0
        %907 = vmatpush1.xpose.msra.mxu0 0.0
        %908 = vmatprep.subr.mxu0 0.0
        %909 = vmatpush1.xpose.msra.mxu0 0.0
        %910 = vmatprep.subr.mxu0 0.0
        %911 = vmatpush1.xpose.msra.mxu0 0.0
        %912 = vmatprep.subr.mxu0 0.0
        %913 = vmatpush1.xpose.msra.mxu0 0.0
        %914 = vmatprep.subr.mxu0 0.0
        %915 = vmatpush1.xpose.msra.mxu0 0.0
        %916 = vmatprep.subr.mxu0 0.0
        %917 = vmatpush1.xpose.msra.mxu0 0.0
        %918 = vmatprep.subr.mxu0 0.0
        %919 = vmatpush1.xpose.msra.mxu0 0.0
        %920 = vmatprep.subr.mxu0 0.0
        %921 = vmatpush1.xpose.msra.mxu0 0.0
        %922 = vmatprep.subr.mxu0 0.0
        %923 = vmatpush1.xpose.msra.mxu0 0.0
        %924 = vmatprep.subr.mxu0 0.0
        %925 = vmatpush1.xpose.msra.mxu0 0.0
        %926 = vmatprep.subr.mxu0 0.0
        %927 = vmatpush1.xpose.msra.mxu0 0.0
        %928 = vmatprep.subr.mxu0 0.0
        %929 = vmatpush1.xpose.msra.mxu0 0.0
        %930 = vmatprep.subr.mxu0 0.0
        %931 = vmatpush1.xpose.msra.mxu0 0.0
        %932 = vmatprep.subr.mxu0 0.0
        %933 = vmatpush1.xpose.msra.mxu0 0.0
        %934 = vmatprep.subr.mxu0 0.0
        %935 = vmatpush1.xpose.msra.mxu0 0.0
        %936 = vmatprep.subr.mxu0 0.0
        %937 = vmatpush1.xpose.msra.mxu0 0.0
        %938 = vmatprep.subr.mxu0 0.0
        %939 = vmatpush1.xpose.msra.mxu0 0.0
        %940 = vmatprep.mubr.f32.mxu0 0.0
        %941 = vmatmul.mubr.f32.gmra.mrb[0].mxu0 %v871
        %v942 = vpop.f32.mrb[0].mxu0
        %v943 = vadd.f32 0.0, %v942
        %v944 = vpop.f32.mrb[0].mxu0
        %945 = vdwg.mxu0
        %v946 = vsel %vm795, %v788, 0
        %v949 = vsel %vm795, %v793, 0
        %951 = vmatprep.subr.mxu0 0.0
        %952 = vmatpush1.xpose.msra.mxu0 %v949
        %953 = vmatprep.subr.mxu0 0.0
        %954 = vmatpush1.xpose.msra.mxu0 0.0
        %955 = vmatprep.subr.mxu0 0.0
        %956 = vmatpush1.xpose.msra.mxu0 0.0
        %957 = vmatprep.subr.mxu0 0.0
        %958 = vmatpush1.xpose.msra.mxu0 0.0
        %959 = vmatprep.subr.mxu0 0.0
        %960 = vmatpush1.xpose.msra.mxu0 0.0
        %961 = vmatprep.subr.mxu0 0.0
        %962 = vmatpush1.xpose.msra.mxu0 0.0
        %963 = vmatprep.subr.mxu0 0.0
        %964 = vmatpush1.xpose.msra.mxu0 0.0
        %965 = vmatprep.subr.mxu0 0.0
        %966 = vmatpush1.xpose.msra.mxu0 0.0
        %967 = vmatprep.subr.mxu0 0.0
        %968 = vmatpush1.xpose.msra.mxu0 0.0
        %969 = vmatprep.subr.mxu0 0.0
        %970 = vmatpush1.xpose.msra.mxu0 0.0
        %971 = vmatprep.subr.mxu0 0.0
        %972 = vmatpush1.xpose.msra.mxu0 0.0
        %973 = vmatprep.subr.mxu0 0.0
        %974 = vmatpush1.xpose.msra.mxu0 0.0
        %975 = vmatprep.subr.mxu0 0.0
        %976 = vmatpush1.xpose.msra.mxu0 0.0
        %977 = vmatprep.subr.mxu0 0.0
        %978 = vmatpush1.xpose.msra.mxu0 0.0
        %979 = vmatprep.subr.mxu0 0.0
        %980 = vmatpush1.xpose.msra.mxu0 0.0
        %981 = vmatprep.subr.mxu0 0.0
        %982 = vmatpush1.xpose.msra.mxu0 0.0
        %983 = vmatprep.subr.mxu0 0.0
        %984 = vmatpush1.xpose.msra.mxu0 0.0
        %985 = vmatprep.subr.mxu0 0.0
        %986 = vmatpush1.xpose.msra.mxu0 0.0
        %987 = vmatprep.subr.mxu0 0.0
        %988 = vmatpush1.xpose.msra.mxu0 0.0
        %989 = vmatprep.subr.mxu0 0.0
        %990 = vmatpush1.xpose.msra.mxu0 0.0
        %991 = vmatprep.subr.mxu0 0.0
        %992 = vmatpush1.xpose.msra.mxu0 0.0
        %993 = vmatprep.subr.mxu0 0.0
        %994 = vmatpush1.xpose.msra.mxu0 0.0
        %995 = vmatprep.subr.mxu0 0.0
        %996 = vmatpush1.xpose.msra.mxu0 0.0
        %997 = vmatprep.subr.mxu0 0.0
        %998 = vmatpush1.xpose.msra.mxu0 0.0
        %999 = vmatprep.subr.mxu0 0.0
        %1000 = vmatpush1.xpose.msra.mxu0 0.0
        %1001 = vmatprep.subr.mxu0 0.0
        %1002 = vmatpush1.xpose.msra.mxu0 0.0
        %1003 = vmatprep.subr.mxu0 0.0
        %1004 = vmatpush1.xpose.msra.mxu0 0.0
        %1005 = vmatprep.subr.mxu0 0.0
        %1006 = vmatpush1.xpose.msra.mxu0 0.0
        %1007 = vmatprep.subr.mxu0 0.0
        %1008 = vmatpush1.xpose.msra.mxu0 0.0
        %1009 = vmatprep.subr.mxu0 0.0
        %1010 = vmatpush1.xpose.msra.mxu0 0.0
        %1011 = vmatprep.subr.mxu0 0.0
        %1012 = vmatpush1.xpose.msra.mxu0 0.0
        %1013 = vmatprep.subr.mxu0 0.0
        %1014 = vmatpush1.xpose.msra.mxu0 0.0
        %1015 = vmatprep.mubr.f32.mxu0 0.0
        %1016 = vmatmul.mubr.f32.gmra.mrb[0].mxu0 %v946
        %v1017 = vpop.f32.mrb[0].mxu0
        %v1018 = vadd.f32 0.0, %v1017
        %v1019 = vpop.f32.mrb[0].mxu0
        %1020 = vdwg.mxu0
        %v1021 = vsel %vm795, %v790, 0
        %v1024 = vsel %vm795, %v794, 0
        %1026 = vmatprep.subr.mxu0 0.0
        %1027 = vmatpush1.xpose.msra.mxu0 %v1024
        %1028 = vmatprep.subr.mxu0 0.0
        %1029 = vmatpush1.xpose.msra.mxu0 0.0
        %1030 = vmatprep.subr.mxu0 0.0
        %1031 = vmatpush1.xpose.msra.mxu0 0.0
        %1032 = vmatprep.subr.mxu0 0.0
        %1033 = vmatpush1.xpose.msra.mxu0 0.0
        %1034 = vmatprep.subr.mxu0 0.0
        %1035 = vmatpush1.xpose.msra.mxu0 0.0
        %1036 = vmatprep.subr.mxu0 0.0
        %1037 = vmatpush1.xpose.msra.mxu0 0.0
        %1038 = vmatprep.subr.mxu0 0.0
        %1039 = vmatpush1.xpose.msra.mxu0 0.0
        %1040 = vmatprep.subr.mxu0 0.0
        %1041 = vmatpush1.xpose.msra.mxu0 0.0
        %1042 = vmatprep.subr.mxu0 0.0
        %1043 = vmatpush1.xpose.msra.mxu0 0.0
        %1044 = vmatprep.subr.mxu0 0.0
        %1045 = vmatpush1.xpose.msra.mxu0 0.0
        %1046 = vmatprep.subr.mxu0 0.0
        %1047 = vmatpush1.xpose.msra.mxu0 0.0
        %1048 = vmatprep.subr.mxu0 0.0
        %1049 = vmatpush1.xpose.msra.mxu0 0.0
        %1050 = vmatprep.subr.mxu0 0.0
        %1051 = vmatpush1.xpose.msra.mxu0 0.0
        %1052 = vmatprep.subr.mxu0 0.0
        %1053 = vmatpush1.xpose.msra.mxu0 0.0
        %1054 = vmatprep.subr.mxu0 0.0
        %1055 = vmatpush1.xpose.msra.mxu0 0.0
        %1056 = vmatprep.subr.mxu0 0.0
        %1057 = vmatpush1.xpose.msra.mxu0 0.0
        %1058 = vmatprep.subr.mxu0 0.0
        %1059 = vmatpush1.xpose.msra.mxu0 0.0
        %1060 = vmatprep.subr.mxu0 0.0
        %1061 = vmatpush1.xpose.msra.mxu0 0.0
        %1062 = vmatprep.subr.mxu0 0.0
        %1063 = vmatpush1.xpose.msra.mxu0 0.0
        %1064 = vmatprep.subr.mxu0 0.0
        %1065 = vmatpush1.xpose.msra.mxu0 0.0
        %1066 = vmatprep.subr.mxu0 0.0
        %1067 = vmatpush1.xpose.msra.mxu0 0.0
        %1068 = vmatprep.subr.mxu0 0.0
        %1069 = vmatpush1.xpose.msra.mxu0 0.0
        %1070 = vmatprep.subr.mxu0 0.0
        %1071 = vmatpush1.xpose.msra.mxu0 0.0
        %1072 = vmatprep.subr.mxu0 0.0
        %1073 = vmatpush1.xpose.msra.mxu0 0.0
        %1074 = vmatprep.subr.mxu0 0.0
        %1075 = vmatpush1.xpose.msra.mxu0 0.0
        %1076 = vmatprep.subr.mxu0 0.0
        %1077 = vmatpush1.xpose.msra.mxu0 0.0
        %1078 = vmatprep.subr.mxu0 0.0
        %1079 = vmatpush1.xpose.msra.mxu0 0.0
        %1080 = vmatprep.subr.mxu0 0.0
        %1081 = vmatpush1.xpose.msra.mxu0 0.0
        %1082 = vmatprep.subr.mxu0 0.0
        %1083 = vmatpush1.xpose.msra.mxu0 0.0
        %1084 = vmatprep.subr.mxu0 0.0
        %1085 = vmatpush1.xpose.msra.mxu0 0.0
        %1086 = vmatprep.subr.mxu0 0.0
        %1087 = vmatpush1.xpose.msra.mxu0 0.0
        %1088 = vmatprep.subr.mxu0 0.0
        %1089 = vmatpush1.xpose.msra.mxu0 0.0
        %1090 = vmatprep.mubr.f32.mxu0 0.0
        %1091 = vmatmul.mubr.f32.gmra.mrb[0].mxu0 %v1021
        %v1092 = vpop.f32.mrb[0].mxu0
        %v1093 = vadd.f32 0.0, %v1092
        %v1094 = vpop.f32.mrb[0].mxu0
        %1095 = vdwg.mxu0
        %v1096 = vsel %vm795, %v868, -inf
        %1097 = vmax.xlane.f32.xlu0 %v1096
        %v1098 = vpop.xlane.xlu0 %1097
        %v1099 = vsel %vm795, %v943, -inf
        %1100 = vmax.xlane.f32.xlu0 %v1099
        %v1101 = vpop.xlane.xlu0 %1100
        %v1102 = vsel %vm795, %v1018, -inf
        %1103 = vmax.xlane.f32.xlu0 %v1102
        %v1104 = vpop.xlane.xlu0 %1103
        %v1105 = vsel %vm795, %v1093, -inf
        %1106 = vmax.xlane.f32.xlu0 %v1105
        %v1107 = vpop.xlane.xlu0 %1106
        %v1108 = vsub.f32 %v868, %v1098
        %v1109 = vsub.f32 %v943, %v1101
        %v1110 = vsub.f32 %v1018, %v1104
        %v1111 = vsub.f32 %v1093, %v1107
        %v1112 = vmul.f32 %v1108, 1.442695
        %v1113 = vpow.pop %v1112
        %v1114 = vmul.f32 %v1109, 1.442695
        %v1115 = vpow.pop %v1114
        %v1116 = vmul.f32 %v1110, 1.442695
        %v1117 = vpow.pop %v1116
        %v1118 = vmul.f32 %v1111, 1.442695
        %v1119 = vpow.pop %v1118
        %v1120 = vsel %vm795, %v1113, 0.0
        %1121 = vadd.xlane.f32.xlu0 %v1120
        %v1122 = vpop.xlane.xlu0 %1121
        %v1123 = vsel %vm795, %v1115, 0.0
        %1124 = vadd.xlane.f32.xlu0 %v1123
        %v1125 = vpop.xlane.xlu0 %1124
        %v1126 = vsel %vm795, %v1117, 0.0
        %1127 = vadd.xlane.f32.xlu0 %v1126
        %v1128 = vpop.xlane.xlu0 %1127
        %v1129 = vsel %vm795, %v1119, 0.0
        %1130 = vadd.xlane.f32.xlu0 %v1129
        %v1131 = vpop.xlane.xlu0 %1130
        %v1132 = vrcp.pop %v1122
        %v1133 = vmul.f32 %v1113, %v1132
        %v1134 = vrcp.pop %v1125
        %v1135 = vmul.f32 %v1115, %v1134
        %v1136 = vrcp.pop %v1128
        %v1137 = vmul.f32 %v1117, %v1136
        %v1138 = vrcp.pop %v1131
        %v1139 = vmul.f32 %v1119, %v1138
        %v1140 = vld [vmem:[#allocation3] sm:$0xff]
        %v1141 = vld [vmem:[#allocation3 + $0x8] sm:$0xff]
        %v1142 = vld [vmem:[#allocation3 + $0x10] sm:$0xff]
        %v1143 = vld [vmem:[#allocation3 + $0x18] sm:$0xff]
        %v1145 = vsel %vm795, %v1133, 0
        %1147 = vmatprep.subr.mxu0 0.0
        %1148 = vmatpush1.msra.mxu0 %v1140
        %1149 = vmatprep.subr.mxu0 0.0
        %1150 = vmatpush1.msra.mxu0 0.0
        %1151 = vmatprep.subr.mxu0 0.0
        %1152 = vmatpush1.msra.mxu0 0.0
        %1153 = vmatprep.subr.mxu0 0.0
        %1154 = vmatpush1.msra.mxu0 0.0
        %1155 = vmatprep.subr.mxu0 0.0
        %1156 = vmatpush1.msra.mxu0 0.0
        %1157 = vmatprep.subr.mxu0 0.0
        %1158 = vmatpush1.msra.mxu0 0.0
        %1159 = vmatprep.subr.mxu0 0.0
        %1160 = vmatpush1.msra.mxu0 0.0
        %1161 = vmatprep.subr.mxu0 0.0
        %1162 = vmatpush1.msra.mxu0 0.0
        %1163 = vmatprep.subr.mxu0 0.0
        %1164 = vmatpush1.msra.mxu0 0.0
        %1165 = vmatprep.subr.mxu0 0.0
        %1166 = vmatpush1.msra.mxu0 0.0
        %1167 = vmatprep.subr.mxu0 0.0
        %1168 = vmatpush1.msra.mxu0 0.0
        %1169 = vmatprep.subr.mxu0 0.0
        %1170 = vmatpush1.msra.mxu0 0.0
        %1171 = vmatprep.subr.mxu0 0.0
        %1172 = vmatpush1.msra.mxu0 0.0
        %1173 = vmatprep.subr.mxu0 0.0
        %1174 = vmatpush1.msra.mxu0 0.0
        %1175 = vmatprep.subr.mxu0 0.0
        %1176 = vmatpush1.msra.mxu0 0.0
        %1177 = vmatprep.subr.mxu0 0.0
        %1178 = vmatpush1.msra.mxu0 0.0
        %1179 = vmatprep.subr.mxu0 0.0
        %1180 = vmatpush1.msra.mxu0 0.0
        %1181 = vmatprep.subr.mxu0 0.0
        %1182 = vmatpush1.msra.mxu0 0.0
        %1183 = vmatprep.subr.mxu0 0.0
        %1184 = vmatpush1.msra.mxu0 0.0
        %1185 = vmatprep.subr.mxu0 0.0
        %1186 = vmatpush1.msra.mxu0 0.0
        %1187 = vmatprep.subr.mxu0 0.0
        %1188 = vmatpush1.msra.mxu0 0.0
        %1189 = vmatprep.subr.mxu0 0.0
        %1190 = vmatpush1.msra.mxu0 0.0
        %1191 = vmatprep.subr.mxu0 0.0
        %1192 = vmatpush1.msra.mxu0 0.0
        %1193 = vmatprep.subr.mxu0 0.0
        %1194 = vmatpush1.msra.mxu0 0.0
        %1195 = vmatprep.subr.mxu0 0.0
        %1196 = vmatpush1.msra.mxu0 0.0
        %1197 = vmatprep.subr.mxu0 0.0
        %1198 = vmatpush1.msra.mxu0 0.0
        %1199 = vmatprep.subr.mxu0 0.0
        %1200 = vmatpush1.msra.mxu0 0.0
        %1201 = vmatprep.subr.mxu0 0.0
        %1202 = vmatpush1.msra.mxu0 0.0
        %1203 = vmatprep.subr.mxu0 0.0
        %1204 = vmatpush1.msra.mxu0 0.0
        %1205 = vmatprep.subr.mxu0 0.0
        %1206 = vmatpush1.msra.mxu0 0.0
        %1207 = vmatprep.subr.mxu0 0.0
        %1208 = vmatpush1.msra.mxu0 0.0
        %1209 = vmatprep.subr.mxu0 0.0
        %1210 = vmatpush1.msra.mxu0 0.0
        %1211 = vmatprep.mubr.f32.mxu0 0.0
        %1212 = vmatmul.mubr.f32.gmra.mrb[0].mxu0 %v1145
        %v1213 = vpop.f32.mrb[0].mxu0
        %v1214 = vadd.f32 0.0, %v1213
        %v1215 = vpop.f32.mrb[0].mxu0
        %1216 = vdwg.mxu0
        %v1218 = vsel %vm795, %v1135, 0
        %1220 = vmatprep.subr.mxu0 0.0
        %1221 = vmatpush1.msra.mxu0 %v1141
        %1222 = vmatprep.subr.mxu0 0.0
        %1223 = vmatpush1.msra.mxu0 0.0
        %1224 = vmatprep.subr.mxu0 0.0
        %1225 = vmatpush1.msra.mxu0 0.0
        %1226 = vmatprep.subr.mxu0 0.0
        %1227 = vmatpush1.msra.mxu0 0.0
        %1228 = vmatprep.subr.mxu0 0.0
        %1229 = vmatpush1.msra.mxu0 0.0
        %1230 = vmatprep.subr.mxu0 0.0
        %1231 = vmatpush1.msra.mxu0 0.0
        %1232 = vmatprep.subr.mxu0 0.0
        %1233 = vmatpush1.msra.mxu0 0.0
        %1234 = vmatprep.subr.mxu0 0.0
        %1235 = vmatpush1.msra.mxu0 0.0
        %1236 = vmatprep.subr.mxu0 0.0
        %1237 = vmatpush1.msra.mxu0 0.0
        %1238 = vmatprep.subr.mxu0 0.0
        %1239 = vmatpush1.msra.mxu0 0.0
        %1240 = vmatprep.subr.mxu0 0.0
        %1241 = vmatpush1.msra.mxu0 0.0
        %1242 = vmatprep.subr.mxu0 0.0
        %1243 = vmatpush1.msra.mxu0 0.0
        %1244 = vmatprep.subr.mxu0 0.0
        %1245 = vmatpush1.msra.mxu0 0.0
        %1246 = vmatprep.subr.mxu0 0.0
        %1247 = vmatpush1.msra.mxu0 0.0
        %1248 = vmatprep.subr.mxu0 0.0
        %1249 = vmatpush1.msra.mxu0 0.0
        %1250 = vmatprep.subr.mxu0 0.0
        %1251 = vmatpush1.msra.mxu0 0.0
        %1252 = vmatprep.subr.mxu0 0.0
        %1253 = vmatpush1.msra.mxu0 0.0
        %1254 = vmatprep.subr.mxu0 0.0
        %1255 = vmatpush1.msra.mxu0 0.0
        %1256 = vmatprep.subr.mxu0 0.0
        %1257 = vmatpush1.msra.mxu0 0.0
        %1258 = vmatprep.subr.mxu0 0.0
        %1259 = vmatpush1.msra.mxu0 0.0
        %1260 = vmatprep.subr.mxu0 0.0
        %1261 = vmatpush1.msra.mxu0 0.0
        %1262 = vmatprep.subr.mxu0 0.0
        %1263 = vmatpush1.msra.mxu0 0.0
        %1264 = vmatprep.subr.mxu0 0.0
        %1265 = vmatpush1.msra.mxu0 0.0
        %1266 = vmatprep.subr.mxu0 0.0
        %1267 = vmatpush1.msra.mxu0 0.0
        %1268 = vmatprep.subr.mxu0 0.0
        %1269 = vmatpush1.msra.mxu0 0.0
        %1270 = vmatprep.subr.mxu0 0.0
        %1271 = vmatpush1.msra.mxu0 0.0
        %1272 = vmatprep.subr.mxu0 0.0
        %1273 = vmatpush1.msra.mxu0 0.0
        %1274 = vmatprep.subr.mxu0 0.0
        %1275 = vmatpush1.msra.mxu0 0.0
        %1276 = vmatprep.subr.mxu0 0.0
        %1277 = vmatpush1.msra.mxu0 0.0
        %1278 = vmatprep.subr.mxu0 0.0
        %1279 = vmatpush1.msra.mxu0 0.0
        %1280 = vmatprep.subr.mxu0 0.0
        %1281 = vmatpush1.msra.mxu0 0.0
        %1282 = vmatprep.subr.mxu0 0.0
        %1283 = vmatpush1.msra.mxu0 0.0
        %1284 = vmatprep.mubr.f32.mxu0 0.0
        %1285 = vmatmul.mubr.f32.gmra.mrb[0].mxu0 %v1218
        %v1286 = vpop.f32.mrb[0].mxu0
        %v1287 = vadd.f32 0.0, %v1286
        %v1288 = vpop.f32.mrb[0].mxu0
        %1289 = vdwg.mxu0
        %v1291 = vsel %vm795, %v1137, 0
        %1293 = vmatprep.subr.mxu0 0.0
        %1294 = vmatpush1.msra.mxu0 %v1142
        %1295 = vmatprep.subr.mxu0 0.0
        %1296 = vmatpush1.msra.mxu0 0.0
        %1297 = vmatprep.subr.mxu0 0.0
        %1298 = vmatpush1.msra.mxu0 0.0
        %1299 = vmatprep.subr.mxu0 0.0
        %1300 = vmatpush1.msra.mxu0 0.0
        %1301 = vmatprep.subr.mxu0 0.0
        %1302 = vmatpush1.msra.mxu0 0.0
        %1303 = vmatprep.subr.mxu0 0.0
        %1304 = vmatpush1.msra.mxu0 0.0
        %1305 = vmatprep.subr.mxu0 0.0
        %1306 = vmatpush1.msra.mxu0 0.0
        %1307 = vmatprep.subr.mxu0 0.0
        %1308 = vmatpush1.msra.mxu0 0.0
        %1309 = vmatprep.subr.mxu0 0.0
        %1310 = vmatpush1.msra.mxu0 0.0
        %1311 = vmatprep.subr.mxu0 0.0
        %1312 = vmatpush1.msra.mxu0 0.0
        %1313 = vmatprep.subr.mxu0 0.0
        %1314 = vmatpush1.msra.mxu0 0.0
        %1315 = vmatprep.subr.mxu0 0.0
        %1316 = vmatpush1.msra.mxu0 0.0
        %1317 = vmatprep.subr.mxu0 0.0
        %1318 = vmatpush1.msra.mxu0 0.0
        %1319 = vmatprep.subr.mxu0 0.0
        %1320 = vmatpush1.msra.mxu0 0.0
        %1321 = vmatprep.subr.mxu0 0.0
        %1322 = vmatpush1.msra.mxu0 0.0
        %1323 = vmatprep.subr.mxu0 0.0
        %1324 = vmatpush1.msra.mxu0 0.0
        %1325 = vmatprep.subr.mxu0 0.0
        %1326 = vmatpush1.msra.mxu0 0.0
        %1327 = vmatprep.subr.mxu0 0.0
        %1328 = vmatpush1.msra.mxu0 0.0
        %1329 = vmatprep.subr.mxu0 0.0
        %1330 = vmatpush1.msra.mxu0 0.0
        %1331 = vmatprep.subr.mxu0 0.0
        %1332 = vmatpush1.msra.mxu0 0.0
        %1333 = vmatprep.subr.mxu0 0.0
        %1334 = vmatpush1.msra.mxu0 0.0
        %1335 = vmatprep.subr.mxu0 0.0
        %1336 = vmatpush1.msra.mxu0 0.0
        %1337 = vmatprep.subr.mxu0 0.0
        %1338 = vmatpush1.msra.mxu0 0.0
        %1339 = vmatprep.subr.mxu0 0.0
        %1340 = vmatpush1.msra.mxu0 0.0
        %1341 = vmatprep.subr.mxu0 0.0
        %1342 = vmatpush1.msra.mxu0 0.0
        %1343 = vmatprep.subr.mxu0 0.0
        %1344 = vmatpush1.msra.mxu0 0.0
        %1345 = vmatprep.subr.mxu0 0.0
        %1346 = vmatpush1.msra.mxu0 0.0
        %1347 = vmatprep.subr.mxu0 0.0
        %1348 = vmatpush1.msra.mxu0 0.0
        %1349 = vmatprep.subr.mxu0 0.0
        %1350 = vmatpush1.msra.mxu0 0.0
        %1351 = vmatprep.subr.mxu0 0.0
        %1352 = vmatpush1.msra.mxu0 0.0
        %1353 = vmatprep.subr.mxu0 0.0
        %1354 = vmatpush1.msra.mxu0 0.0
        %1355 = vmatprep.subr.mxu0 0.0
        %1356 = vmatpush1.msra.mxu0 0.0
        %1357 = vmatprep.mubr.f32.mxu0 0.0
        %1358 = vmatmul.mubr.f32.gmra.mrb[0].mxu0 %v1291
        %v1359 = vpop.f32.mrb[0].mxu0
        %v1360 = vadd.f32 0.0, %v1359
        %v1361 = vpop.f32.mrb[0].mxu0
        %1362 = vdwg.mxu0
        %v1364 = vsel %vm795, %v1139, 0
        %1366 = vmatprep.subr.mxu0 0.0
        %1367 = vmatpush1.msra.mxu0 %v1143
        %1368 = vmatprep.subr.mxu0 0.0
        %1369 = vmatpush1.msra.mxu0 0.0
        %1370 = vmatprep.subr.mxu0 0.0
        %1371 = vmatpush1.msra.mxu0 0.0
        %1372 = vmatprep.subr.mxu0 0.0
        %1373 = vmatpush1.msra.mxu0 0.0
        %1374 = vmatprep.subr.mxu0 0.0
        %1375 = vmatpush1.msra.mxu0 0.0
        %1376 = vmatprep.subr.mxu0 0.0
        %1377 = vmatpush1.msra.mxu0 0.0
        %1378 = vmatprep.subr.mxu0 0.0
        %1379 = vmatpush1.msra.mxu0 0.0
        %1380 = vmatprep.subr.mxu0 0.0
        %1381 = vmatpush1.msra.mxu0 0.0
        %1382 = vmatprep.subr.mxu0 0.0
        %1383 = vmatpush1.msra.mxu0 0.0
        %1384 = vmatprep.subr.mxu0 0.0
        %1385 = vmatpush1.msra.mxu0 0.0
        %1386 = vmatprep.subr.mxu0 0.0
        %1387 = vmatpush1.msra.mxu0 0.0
        %1388 = vmatprep.subr.mxu0 0.0
        %1389 = vmatpush1.msra.mxu0 0.0
        %1390 = vmatprep.subr.mxu0 0.0
        %1391 = vmatpush1.msra.mxu0 0.0
        %1392 = vmatprep.subr.mxu0 0.0
        %1393 = vmatpush1.msra.mxu0 0.0
        %1394 = vmatprep.subr.mxu0 0.0
        %1395 = vmatpush1.msra.mxu0 0.0
        %1396 = vmatprep.subr.mxu0 0.0
        %1397 = vmatpush1.msra.mxu0 0.0
        %1398 = vmatprep.subr.mxu0 0.0
        %1399 = vmatpush1.msra.mxu0 0.0
        %1400 = vmatprep.subr.mxu0 0.0
        %1401 = vmatpush1.msra.mxu0 0.0
        %1402 = vmatprep.subr.mxu0 0.0
        %1403 = vmatpush1.msra.mxu0 0.0
        %1404 = vmatprep.subr.mxu0 0.0
        %1405 = vmatpush1.msra.mxu0 0.0
        %1406 = vmatprep.subr.mxu0 0.0
        %1407 = vmatpush1.msra.mxu0 0.0
        %1408 = vmatprep.subr.mxu0 0.0
        %1409 = vmatpush1.msra.mxu0 0.0
        %1410 = vmatprep.subr.mxu0 0.0
        %1411 = vmatpush1.msra.mxu0 0.0
        %1412 = vmatprep.subr.mxu0 0.0
        %1413 = vmatpush1.msra.mxu0 0.0
        %1414 = vmatprep.subr.mxu0 0.0
        %1415 = vmatpush1.msra.mxu0 0.0
        %1416 = vmatprep.subr.mxu0 0.0
        %1417 = vmatpush1.msra.mxu0 0.0
        %1418 = vmatprep.subr.mxu0 0.0
        %1419 = vmatpush1.msra.mxu0 0.0
        %1420 = vmatprep.subr.mxu0 0.0
        %1421 = vmatpush1.msra.mxu0 0.0
        %1422 = vmatprep.subr.mxu0 0.0
        %1423 = vmatpush1.msra.mxu0 0.0
        %1424 = vmatprep.subr.mxu0 0.0
        %1425 = vmatpush1.msra.mxu0 0.0
        %1426 = vmatprep.subr.mxu0 0.0
        %1427 = vmatpush1.msra.mxu0 0.0
        %1428 = vmatprep.subr.mxu0 0.0
        %1429 = vmatpush1.msra.mxu0 0.0
        %1430 = vmatprep.mubr.f32.mxu0 0.0
        %1431 = vmatmul.mubr.f32.gmra.mrb[0].mxu0 %v1364
        %v1432 = vpop.f32.mrb[0].mxu0
        %v1433 = vadd.f32 0.0, %v1432
        %v1434 = vpop.f32.mrb[0].mxu0
        %1435 = vdwg.mxu0
        %1437 = vrot.lane.b32.xlu0 %v1287, 8
        %v1438 = vpop.permute.xlu0 %1437
        %1441 = vrot.lane.b32.xlu0 %v1360, 16
        %v1442 = vpop.permute.xlu0 %1441
        %1445 = vrot.lane.b32.xlu0 %v1433, 24
        %v1446 = vpop.permute.xlu0 %1445
        %v1448 = vsel %vm795, %v1214, %v1438
        %vm1449 = vcmask 130048
        %v1450 = vsel %vm1449, %v1448, %v1442
        %vm1451 = vcmask 195584
        %v1452 = vsel %vm1451, %v1450, %v1446
        %v1453 = vld [vmem:[%s7] sm:$0xff]
        %v1454 = vld [vmem:[%s7 + $0x8] sm:$0xff]
        %v1455 = vld [vmem:[%s7 + $0x10] sm:$0xff]
        %v1456 = vld [vmem:[%s7 + $0x18] sm:$0xff]
        %v1457 = vld [vmem:[%s8] sm:$0x1]
        %v1459 = vlaneseq
        %v1460 = vshrl.u32 %v1459, 7
        %v1461 = vsub.s32 0, %v1460
        %v1462 = vrot.slane %v1457, %v1461
        %v1465 = vsel %vm710, %v1452, 0
        %1467 = vmatprep.subr.mxu0 0.0
        %1468 = vmatpush1.msra.mxu0 %v1453
        %1469 = vmatprep.subr.mxu0 0.0
        %1470 = vmatpush1.msra.mxu0 %v1454
        %1471 = vmatprep.subr.mxu0 0.0
        %1472 = vmatpush1.msra.mxu0 %v1455
        %1473 = vmatprep.subr.mxu0 0.0
        %1474 = vmatpush1.msra.mxu0 %v1456
        %1475 = vmatprep.subr.mxu0 0.0
        %1476 = vmatpush1.msra.mxu0 0.0
        %1477 = vmatprep.subr.mxu0 0.0
        %1478 = vmatpush1.msra.mxu0 0.0
        %1479 = vmatprep.subr.mxu0 0.0
        %1480 = vmatpush1.msra.mxu0 0.0
        %1481 = vmatprep.subr.mxu0 0.0
        %1482 = vmatpush1.msra.mxu0 0.0
        %1483 = vmatprep.subr.mxu0 0.0
        %1484 = vmatpush1.msra.mxu0 0.0
        %1485 = vmatprep.subr.mxu0 0.0
        %1486 = vmatpush1.msra.mxu0 0.0
        %1487 = vmatprep.subr.mxu0 0.0
        %1488 = vmatpush1.msra.mxu0 0.0
        %1489 = vmatprep.subr.mxu0 0.0
        %1490 = vmatpush1.msra.mxu0 0.0
        %1491 = vmatprep.subr.mxu0 0.0
        %1492 = vmatpush1.msra.mxu0 0.0
        %1493 = vmatprep.subr.mxu0 0.0
        %1494 = vmatpush1.msra.mxu0 0.0
        %1495 = vmatprep.subr.mxu0 0.0
        %1496 = vmatpush1.msra.mxu0 0.0
        %1497 = vmatprep.subr.mxu0 0.0
        %1498 = vmatpush1.msra.mxu0 0.0
        %1499 = vmatprep.subr.mxu0 0.0
        %1500 = vmatpush1.msra.mxu0 0.0
        %1501 = vmatprep.subr.mxu0 0.0
        %1502 = vmatpush1.msra.mxu0 0.0
        %1503 = vmatprep.subr.mxu0 0.0
        %1504 = vmatpush1.msra.mxu0 0.0
        %1505 = vmatprep.subr.mxu0 0.0
        %1506 = vmatpush1.msra.mxu0 0.0
        %1507 = vmatprep.subr.mxu0 0.0
        %1508 = vmatpush1.msra.mxu0 0.0
        %1509 = vmatprep.subr.mxu0 0.0
        %1510 = vmatpush1.msra.mxu0 0.0
        %1511 = vmatprep.subr.mxu0 0.0
        %1512 = vmatpush1.msra.mxu0 0.0
        %1513 = vmatprep.subr.mxu0 0.0
        %1514 = vmatpush1.msra.mxu0 0.0
        %1515 = vmatprep.subr.mxu0 0.0
        %1516 = vmatpush1.msra.mxu0 0.0
        %1517 = vmatprep.subr.mxu0 0.0
        %1518 = vmatpush1.msra.mxu0 0.0
        %1519 = vmatprep.subr.mxu0 0.0
        %1520 = vmatpush1.msra.mxu0 0.0
        %1521 = vmatprep.subr.mxu0 0.0
        %1522 = vmatpush1.msra.mxu0 0.0
        %1523 = vmatprep.subr.mxu0 0.0
        %1524 = vmatpush1.msra.mxu0 0.0
        %1525 = vmatprep.subr.mxu0 0.0
        %1526 = vmatpush1.msra.mxu0 0.0
        %1527 = vmatprep.subr.mxu0 0.0
        %1528 = vmatpush1.msra.mxu0 0.0
        %1529 = vmatprep.subr.mxu0 0.0
        %1530 = vmatpush1.msra.mxu0 0.0
        %1531 = vmatprep.mubr.f32.mxu0 0.0
        %1532 = vmatmul.mubr.f32.gmra.mrb[0].mxu0 %v1465
        %v1533 = vpop.f32.mrb[0].mxu0
        %v1534 = vadd.f32 %v1462, %v1533
        %v1535 = vpop.f32.mrb[0].mxu0
        %1536 = vdwg.mxu0
        %v1537 = vadd.f32 %v697, %v1534
        %v1538 = vld [vmem:[%s9] sm:$0x1]
        %v1539 = vld [vmem:[%s10] sm:$0x1]
        %v1540 = vsel %vm710, %v1537, 0.0
        %1541 = vadd.xlane.f32.xlu0 %v1540
        %v1542 = vpop.xlane.xlu0 %1541
        %v1543 = vrcp.pop 32.0
        %v1544 = vmul.f32 %v1542, %v1543
        %v1545 = vsub.f32 %v1537, %v1544
        %v1546 = vmul.f32 %v1545, %v1545
        %v1547 = vsel %vm710, %v1546, 0.0
        %1548 = vadd.xlane.f32.xlu0 %v1547
        %v1549 = vpop.xlane.xlu0 %1548
        %v1550 = vmul.f32 %v1549, %v1543
        %v1551 = vadd.f32 %v1550, 1e-06
        %v1552 = vrsqrt.pop %v1551
        %v1553 = vmul.f32 %v1545, %v1552
        %v1555 = vlaneseq
        %v1556 = vshrl.u32 %v1555, 7
        %v1557 = vsub.s32 0, %v1556
        %v1558 = vrot.slane %v1538, %v1557
        %v1560 = vmul.f32 %v1553, %v1558
        %v1562 = vlaneseq
        %v1563 = vshrl.u32 %v1562, 7
        %v1564 = vsub.s32 0, %v1563
        %v1565 = vrot.slane %v1539, %v1564
        %v1567 = vadd.f32 %v1560, %v1565
        %v1568 = vld [vmem:[#allocation8] sm:$0xff]
        %v1569 = vld [vmem:[#allocation8 + $0x8] sm:$0xff]
        %v1570 = vld [vmem:[#allocation8 + $0x10] sm:$0xff]
        %v1571 = vld [vmem:[#allocation8 + $0x18] sm:$0xff]
        %v1572 = vld [vmem:[%s12] sm:$0x1]
        %v1574 = vlaneseq
        %v1575 = vshrl.u32 %v1574, 7
        %v1576 = vsub.s32 0, %v1575
        %v1577 = vrot.slane %v1572, %v1576
        %v1580 = vsel %vm710, %v1567, 0
        %1582 = vmatprep.subr.mxu0 0.0
        %1583 = vmatpush1.msra.mxu0 %v1568
        %1584 = vmatprep.subr.mxu0 0.0
        %1585 = vmatpush1.msra.mxu0 %v1569
        %1586 = vmatprep.subr.mxu0 0.0
        %1587 = vmatpush1.msra.mxu0 %v1570
        %1588 = vmatprep.subr.mxu0 0.0
        %1589 = vmatpush1.msra.mxu0 %v1571
        %1590 = vmatprep.subr.mxu0 0.0
        %1591 = vmatpush1.msra.mxu0 0.0
        %1592 = vmatprep.subr.mxu0 0.0
        %1593 = vmatpush1.msra.mxu0 0.0
        %1594 = vmatprep.subr.mxu0 0.0
        %1595 = vmatpush1.msra.mxu0 0.0
        %1596 = vmatprep.subr.mxu0 0.0
        %1597 = vmatpush1.msra.mxu0 0.0
        %1598 = vmatprep.subr.mxu0 0.0
        %1599 = vmatpush1.msra.mxu0 0.0
        %1600 = vmatprep.subr.mxu0 0.0
        %1601 = vmatpush1.msra.mxu0 0.0
        %1602 = vmatprep.subr.mxu0 0.0
        %1603 = vmatpush1.msra.mxu0 0.0
        %1604 = vmatprep.subr.mxu0 0.0
        %1605 = vmatpush1.msra.mxu0 0.0
        %1606 = vmatprep.subr.mxu0 0.0
        %1607 = vmatpush1.msra.mxu0 0.0
        %1608 = vmatprep.subr.mxu0 0.0
        %1609 = vmatpush1.msra.mxu0 0.0
        %1610 = vmatprep.subr.mxu0 0.0
        %1611 = vmatpush1.msra.mxu0 0.0
        %1612 = vmatprep.subr.mxu0 0.0
        %1613 = vmatpush1.msra.mxu0 0.0
        %1614 = vmatprep.subr.mxu0 0.0
        %1615 = vmatpush1.msra.mxu0 0.0
        %1616 = vmatprep.subr.mxu0 0.0
        %1617 = vmatpush1.msra.mxu0 0.0
        %1618 = vmatprep.subr.mxu0 0.0
        %1619 = vmatpush1.msra.mxu0 0.0
        %1620 = vmatprep.subr.mxu0 0.0
        %1621 = vmatpush1.msra.mxu0 0.0
        %1622 = vmatprep.subr.mxu0 0.0
        %1623 = vmatpush1.msra.mxu0 0.0
        %1624 = vmatprep.subr.mxu0 0.0
        %1625 = vmatpush1.msra.mxu0 0.0
        %1626 = vmatprep.subr.mxu0 0.0
        %1627 = vmatpush1.msra.mxu0 0.0
        %1628 = vmatprep.subr.mxu0 0.0
        %1629 = vmatpush1.msra.mxu0 0.0
        %1630 = vmatprep.subr.mxu0 0.0
        %1631 = vmatpush1.msra.mxu0 0.0
        %1632 = vmatprep.subr.mxu0 0.0
        %1633 = vmatpush1.msra.mxu0 0.0
        %1634 = vmatprep.subr.mxu0 0.0
        %1635 = vmatpush1.msra.mxu0 0.0
        %1636 = vmatprep.subr.mxu0 0.0
        %1637 = vmatpush1.msra.mxu0 0.0
        %1638 = vmatprep.subr.mxu0 0.0
        %1639 = vmatpush1.msra.mxu0 0.0
        %1640 = vmatprep.subr.mxu0 0.0
        %1641 = vmatpush1.msra.mxu0 0.0
        %1642 = vmatprep.subr.mxu0 0.0
        %1643 = vmatpush1.msra.mxu0 0.0
        %1644 = vmatprep.subr.mxu0 0.0
        %1645 = vmatpush1.msra.mxu0 0.0
        %1646 = vmatprep.mubr.f32.mxu0 0.0
        %1647 = vmatmul.mubr.f32.gmra.mrb[0].mxu0 %v1580
        %v1648 = vpop.f32.mrb[0].mxu0
        %v1649 = vadd.f32 %v1577, %v1648
        %v1650 = vpop.f32.mrb[0].mxu0
        %1651 = vdwg.mxu0
        %v1652 = vmul.f32 %v1649, 0.5
        %v1653 = vmul.f32 %v1649, 0.70710677
        %vm1654 = vcmp.ge.f32.partialorder %v1653, 0.0
        %v1655 = vsel %vm1654, 1.0, -1.0
        %v1656 = vand.u32 2147483647, %v1653
        %v1657 = vmul.f32 %v1656, 0.3275911
        %v1658 = vadd.f32 %v1657, 1.0
        %v1659 = vrcp.pop %v1658
        %v1660 = vmul.f32 1.0, %v1659
        %v1661 = vmul.f32 %v1660, 1.0614054
        %v1662 = vadd.f32 %v1661, -1.4531521
        %v1663 = vmul.f32 %v1662, %v1660
        %v1664 = vadd.f32 %v1663, 1.4214138
        %v1665 = vmul.f32 %v1664, %v1660
        %v1666 = vadd.f32 %v1665, -0.28449672
        %v1667 = vmul.f32 %v1666, %v1660
        %v1668 = vadd.f32 %v1667, 0.2548296
        %v1669 = vmul.f32 %v1668, %v1660
        %v1670 = vsub.f32 0.0, %v1656
        %v1671 = vmul.f32 %v1670, %v1656
        %v1672 = vmul.f32 %v1671, 1.442695
        %v1673 = vpow.pop %v1672
        %v1674 = vmul.f32 %v1669, %v1673
        %v1675 = vsub.f32 1.0, %v1674
        %v1676 = vmul.f32 %v1655, %v1675
        %v1677 = vadd.f32 %v1676, 1.0
        %v1678 = vmul.f32 %v1652, %v1677
        %v1679 = vld [vmem:[%s13] sm:$0xff]
        %v1680 = vld [vmem:[%s13 + $0x8] sm:$0xff]
        %v1681 = vld [vmem:[%s13 + $0x10] sm:$0xff]
        %v1682 = vld [vmem:[%s13 + $0x18] sm:$0xff]
        %v1683 = vld [vmem:[%s13 + $0x20] sm:$0xff]
        %v1684 = vld [vmem:[%s13 + $0x28] sm:$0xff]
        %v1685 = vld [vmem:[%s13 + $0x30] sm:$0xff]
        %v1686 = vld [vmem:[%s13 + $0x38] sm:$0xff]
        %v1687 = vld [vmem:[%s14] sm:$0x1]
        %v1689 = vlaneseq
        %v1690 = vshrl.u32 %v1689, 7
        %v1691 = vsub.s32 0, %v1690
        %v1692 = vrot.slane %v1687, %v1691
        %vm1694 = vcmask 523264
        %v1696 = vsel %vm1694, %v1678, 0
        %1698 = vmatprep.subr.mxu0 0.0
        %1699 = vmatpush1.msra.mxu0 %v1679
        %1700 = vmatprep.subr.mxu0 0.0
        %1701 = vmatpush1.msra.mxu0 %v1680
        %1702 = vmatprep.subr.mxu0 0.0
        %1703 = vmatpush1.msra.mxu0 %v1681
        %1704 = vmatprep.subr.mxu0 0.0
        %1705 = vmatpush1.msra.mxu0 %v1682
        %1706 = vmatprep.subr.mxu0 0.0
        %1707 = vmatpush1.msra.mxu0 %v1683
        %1708 = vmatprep.subr.mxu0 0.0
        %1709 = vmatpush1.msra.mxu0 %v1684
        %1710 = vmatprep.subr.mxu0 0.0
        %1711 = vmatpush1.msra.mxu0 %v1685
        %1712 = vmatprep.subr.mxu0 0.0
        %1713 = vmatpush1.msra.mxu0 %v1686
        %1714 = vmatprep.subr.mxu0 0.0
        %1715 = vmatpush1.msra.mxu0 0.0
        %1716 = vmatprep.subr.mxu0 0.0
        %1717 = vmatpush1.msra.mxu0 0.0
        %1718 = vmatprep.subr.mxu0 0.0
        %1719 = vmatpush1.msra.mxu0 0.0
        %1720 = vmatprep.subr.mxu0 0.0
        %1721 = vmatpush1.msra.mxu0 0.0
        %1722 = vmatprep.subr.mxu0 0.0
        %1723 = vmatpush1.msra.mxu0 0.0
        %1724 = vmatprep.subr.mxu0 0.0
        %1725 = vmatpush1.msra.mxu0 0.0
        %1726 = vmatprep.subr.mxu0 0.0
        %1727 = vmatpush1.msra.mxu0 0.0
        %1728 = vmatprep.subr.mxu0 0.0
        %1729 = vmatpush1.msra.mxu0 0.0
        %1730 = vmatprep.subr.mxu0 0.0
        %1731 = vmatpush1.msra.mxu0 0.0
        %1732 = vmatprep.subr.mxu0 0.0
        %1733 = vmatpush1.msra.mxu0 0.0
        %1734 = vmatprep.subr.mxu0 0.0
        %1735 = vmatpush1.msra.mxu0 0.0
        %1736 = vmatprep.subr.mxu0 0.0
        %1737 = vmatpush1.msra.mxu0 0.0
        %1738 = vmatprep.subr.mxu0 0.0
        %1739 = vmatpush1.msra.mxu0 0.0
        %1740 = vmatprep.subr.mxu0 0.0
        %1741 = vmatpush1.msra.mxu0 0.0
        %1742 = vmatprep.subr.mxu0 0.0
        %1743 = vmatpush1.msra.mxu0 0.0
        %1744 = vmatprep.subr.mxu0 0.0
        %1745 = vmatpush1.msra.mxu0 0.0
        %1746 = vmatprep.subr.mxu0 0.0
        %1747 = vmatpush1.msra.mxu0 0.0
        %1748 = vmatprep.subr.mxu0 0.0
        %1749 = vmatpush1.msra.mxu0 0.0
        %1750 = vmatprep.subr.mxu0 0.0
        %1751 = vmatpush1.msra.mxu0 0.0
        %1752 = vmatprep.subr.mxu0 0.0
        %1753 = vmatpush1.msra.mxu0 0.0
        %1754 = vmatprep.subr.mxu0 0.0
        %1755 = vmatpush1.msra.mxu0 0.0
        %1756 = vmatprep.subr.mxu0 0.0
        %1757 = vmatpush1.msra.mxu0 0.0
        %1758 = vmatprep.subr.mxu0 0.0
        %1759 = vmatpush1.msra.mxu0 0.0
        %1760 = vmatprep.subr.mxu0 0.0
        %1761 = vmatpush1.msra.mxu0 0.0
        %1762 = vmatprep.mubr.f32.mxu0 0.0
        %1763 = vmatmul.mubr.f32.gmra.mrb[0].mxu0 %v1696
        %v1764 = vpop.f32.mrb[0].mxu0
        %v1765 = vadd.f32 %v1692, %v1764
        %v1766 = vpop.f32.mrb[0].mxu0
        %1767 = vdwg.mxu0
        %v1768 = vadd.f32 %v1537, %v1765
        %1769 = vst.msk [vmem:[%s538] sm:$0xff] %vm710, %v1768
        %s1770 = sand.u32 %s375, 1
        %s1771 = scalar_lea.sflag [#allocation7], %s1770
        %s1772 = sand.u32 %s375, 1
        %s1773 = smul.addr %s1772, 8
        %s1774 = scalar_lea.vmem [#allocation10], %s1773
        // Predicated region
        $region93: #{tpu_custom_call.1} parent=79 // pred_check
          %p1775 = pneg %p385
        $region94: #{tpu_custom_call.1} parent=79 // pred_check_branch
          %1777 = sbr.rel (%p1775) target = $region96
        $region95: #{tpu_custom_call.1} parent=79 // pred_region
          %s1779 = ssub.s32 128, 128
          %1780 = vsyncadd %s1771, %s1779
          %s1781 = sadd.s32 %s38, %s37
          %s1782 = smul.addr %s1781, 128
          %s1783 = scalar_lea.hbm %s15, %s1782
          %s1785 = sshll.u32 %s1774, 4
          %s1786 = int_to_ptr.vmem [resolvable:$true] %s1785
          %1788 = dma.vmem_to_hbm [thread:$0]  %s1786, 128, %s1783, %s1771
        $region96: #{tpu_custom_call.1} parent=79 // pred_fallthru
          _
      $region80: #{tpu_custom_call.1} parent=5 // pred_fallthru
        _
      %p1789 = scmp.le.s32.totalorder 2, %s28
      // Predicated region
      $region97: #{tpu_custom_call.1} parent=5 // pred_check
        %p1790 = pneg %p1789
      $region98: #{tpu_custom_call.1} parent=5 // pred_check_branch
        %1792 = sbr.rel (%p1790) target = $region100
      $region99: #{tpu_custom_call.1} parent=5 // pred_region
        %s1793 = ssub.s32 %s28, 2
        // Predicated region
        $region101: #{tpu_custom_call.1} parent=99 // pred_check
          %p1794 = pneg %p391
        $region102: #{tpu_custom_call.1} parent=99 // pred_check_branch
          %1796 = sbr.rel (%p1794) target = $region104
        $region103: #{tpu_custom_call.1} parent=99 // pred_region
          %s1797 = sand.u32 %s376, 1
          %s1798 = scalar_lea.sflag [#allocation7], %s1797
          %s1799 = sand.u32 %s376, 1
          %s1800 = smul.addr %s1799, 8
          %s1801 = scalar_lea.vmem [#allocation10], %s1800
          %1802 = dma.done %s1798, 128
        $region104: #{tpu_custom_call.1} parent=99 // pred_fallthru
          _
      $region100: #{tpu_custom_call.1} parent=5 // pred_fallthru
        _
    $region6: #{tpu_custom_call.1} parent=1 // loop_footer
      %s32 = sadd.s32 1, %s28
    $region7: #{tpu_custom_call.1} parent=1 // loop_footer_branch
      %27 = sbr.rel target = $region3
    $region8: #{tpu_custom_call.1} parent=1 // loop_exit
      _
    %1803 = vsyncpa [#allocation6], 1
    %s1804 = scalar_lea.sflag [#allocation6], 1
    %1805 = vsyncpa %s1804, 1
    %1806 = vsyncpa [#allocation9], 1
    %1807 = vsyncpa [#allocation7], 1
    %s1808 = scalar_lea.sflag [#allocation7], 1
    %1809 = vsyncpa %s1808, 1

</llo_original>
